<compile_context>
chip_gen: v6e
topology: v6e:2x2x1
jax: 0.10.0
libtpu: 0.0.40
codegen_flags: <defaults>
</compile_context>

<pallas_src>
import numpy as np
import jax
import jax.numpy as jnp
from jax.experimental import pallas as pl
from jax.experimental.pallas import tpu as pltpu

EPS = 1e-5  # eps of both InstanceNorm3d and BatchNorm3d

LANE = 128
SUBLANE = 8
STATS_BLOCK_BYTES = 4 * 1024 * 1024      # pass-1 x block target
NORM_BLOCK_BYTES = 4 * 1024 * 1024       # fallback pass-2 x block target
UNIFIED_BLOCK_BYTES = 6 * 1024 * 1024    # unified kernel (1, trc, S) block cap
VMEM_LIMIT_BYTES = 48 * 1024 * 1024      # leaves headroom on v7x's 64 MiB VMEM


# ----------------------------- Pallas kernels ------------------------------

def _make_stats_kernel(num_slabs):
    """Lane-dense (1, trc, 128) sum / sumsq, accumulated over the last
    ("arbitrary") column-tile grid axis via unrolled VPU adds."""
    def kernel(x_ref, sum_ref, sq_ref):
        @pl.when(pl.program_id(3) == 0)
        def _init():
            sum_ref[...] = jnp.zeros_like(sum_ref)
            sq_ref[...] = jnp.zeros_like(sq_ref)

        s = x_ref[:, :, 0:LANE]                    # (1, trc, 128)
        q = s * s
        for k in range(1, num_slabs):              # static unroll, <= 64 slabs
            blk = x_ref[:, :, k * LANE:(k + 1) * LANE]
            s = s + blk
            q = q + blk * blk
        sum_ref[...] += s
        sq_ref[...] += q
    return kernel


def _make_unified_kernel(blocks_in, inv_count):
    """(1, trc, S) blocks: InstanceNorm channel blocks compute their own stats
    and normalize in one pass; BatchNorm blocks apply precomputed scale/shift."""
    def kernel(x_ref, mul_ref, add_ref, o_ref):
        x = x_ref[...]                              # (1, trc, S_pad)
        ci = pl.program_id(1)

        @pl.when(ci < blocks_in)                    # InstanceNorm half
        def _instance():
            s = jnp.sum(x, axis=2, keepdims=True)   # (1, trc, 1)
            sq = jnp.sum(x * x, axis=2, keepdims=True)
            mean = s * inv_count
            var = jnp.maximum(sq * inv_count - mean * mean, 0.0)
            scale = jax.lax.rsqrt(var + EPS) * mul_ref[...]
            shift = add_ref[...] - mean * scale
            o_ref[...] = x * scale + shift

        @pl.when(ci >= blocks_in)                   # BatchNorm half
        def _batch():
            o_ref[...] = x * mul_ref[...] + add_ref[...]
    return kernel


def _norm_kernel(x_ref, scale_ref, shift_ref, o_ref):
    """Fallback elementwise normalize: y = x * scale[channel] + shift[channel]."""
    o_ref[...] = x_ref[...] * scale_ref[...] + shift_ref[...]


# ------------------------------ tiling helpers ------------------------------

def _round_up(v, m):
    return ((v + m - 1) // m) * m


def _channel_tile(nc, offset, full_c, cap):
    """Largest sublane-aligned channel tile dividing `nc` whose blocks stay
    aligned even with a channel offset.  Falls back to the full channel dim
    (always a legal block dim) when no aligned tile exists and offset == 0."""
    best = 0
    t = SUBLANE
    while t <= min(nc, cap):
        if nc % t == 0 and offset % t == 0:
            best = t
        t += SUBLANE
    if best == 0 and nc == full_c and offset == 0:
        best = nc
    return best


def _col_tile(s_pad, row_tile, target_bytes, cap=8192):
    """Largest lane-aligned column tile dividing s_pad within the byte budget."""
    max_elems = max(LANE, target_bytes // (4 * row_tile))
    t = min(s_pad, cap, (max_elems // LANE) * LANE)
    t = max(t, LANE)
    while s_pad % t != 0:
        t -= LANE
    return t


def _unified_channel_tile(half, c, s_pad, max_block_bytes, cap=256):
    """Channel tile for the unified kernel: must divide both `half` and `C`
    (so a block never straddles the IN/BN boundary) and fit the VMEM budget."""
    best = 0
    t = SUBLANE
    while t <= min(half, c, cap):
        if half % t == 0 and c % t == 0 and t * s_pad * 4 <= max_block_bytes:
            best = t
        t += SUBLANE
    return best


# ------------------------------ stats pass ----------------------------------

def _run_stats(x3, c0, nc, s_pad):
    """Per-channel sum / sumsq over channels [c0, c0+nc) of x3 (N, C, S_pad).
    Returns ((N, nc) sums, (N, nc) sums of squares)."""
    N, C, _ = x3.shape
    trc = _channel_tile(nc, c0, C, cap=64)
    tc = _col_tile(s_pad, trc, STATS_BLOCK_BYTES)
    n_cols = s_pad // tc
    n_cblk = nc // trc

    # Column split so v7x's two TensorCores both get parallel tiles even when
    # N * n_cblk is tiny.  Neutral on single-TC v5e/v6e.
    nsplit = 1
    if N * n_cblk < 4:
        for cand in (4, 2):
            if n_cols % cand == 0 and cand <= n_cols:
                nsplit = cand
                break
    cols_per_split = n_cols // nsplit
    coff = c0 // trc

    x_spec = pl.BlockSpec(
        (1, trc, tc),
        lambda sp, n, i, j: (n, coff + i, sp * cols_per_split + j))
    o_spec = pl.BlockSpec(
        (1, trc, LANE), lambda sp, n, i, j: (sp * N + n, i, 0))

    bytes_accessed = 4 * (N * nc * s_pad + 2 * nsplit * N * nc * LANE)
    sums, sqs = pl.pallas_call(
        _make_stats_kernel(tc // LANE),
        grid=(nsplit, N, n_cblk, cols_per_split),
        in_specs=[x_spec],
        out_specs=[o_spec, o_spec],
        out_shape=[jax.ShapeDtypeStruct((nsplit * N, nc, LANE), jnp.float32),
                   jax.ShapeDtypeStruct((nsplit * N, nc, LANE), jnp.float32)],
        compiler_params=pltpu.CompilerParams(
            dimension_semantics=("parallel", "parallel", "parallel", "arbitrary"),
            vmem_limit_bytes=VMEM_LIMIT_BYTES),
        cost_estimate=pl.CostEstimate(
            flops=3 * N * nc * s_pad, transcendentals=0,
            bytes_accessed=bytes_accessed),
    )(x3)

    sums = sums.reshape(nsplit, N, nc, LANE).sum(axis=(0, 3))
    sqs = sqs.reshape(nsplit, N, nc, LANE).sum(axis=(0, 3))
    return sums, sqs


# ------------------------------ JAX wrapper ---------------------------------

def ibn_forward(x, gamma_in, beta_in, gamma_bn, beta_bn):
    """x: (N, C, D, H, W) float32; gamma/beta_in: (half,); gamma/beta_bn: (C-half,)."""
    N, C, D, H, W = x.shape
    half = int(C * 0.5)
    cb = C - half
    S = D * H * W
    s_pad = _round_up(S, LANE)

    x3 = x.reshape(N, C, S)
    if s_pad != S:
        # Zero padding is stats-safe (glue divides by the true S); padded output
        # lanes are sliced off at the end.
        x3 = jnp.pad(x3, ((0, 0), (0, 0), (0, s_pad - S)))
    inv_s = 1.0 / S

    trc_u = _unified_channel_tile(half, C, s_pad, UNIFIED_BLOCK_BYTES) if half > 0 else 0
    trc_bn = _channel_tile(cb, half, C, cap=64) if (cb > 0 and half > 0) else 0
    use_unified = trc_u > 0 and trc_bn > 0 and trc_bn % SUBLANE == 0

    if use_unified:
        # --- fast path: BN-only stats + fused IN/BN normalize (~2.5x traffic) ---
        sums, sqs = _run_stats(x3, half, cb, s_pad)          # (N, cb) each
        tot = jnp.sum(sums, axis=0)                          # (cb,)
        tot_sq = jnp.sum(sqs, axis=0)
        m_bn = tot / (N * S)
        v_bn = jnp.maximum(tot_sq / (N * S) - m_bn * m_bn, 0.0)
        sc_bn = jax.lax.rsqrt(v_bn + EPS) * gamma_bn
        sh_bn = beta_bn - m_bn * sc_bn

        # IN channels carry (gamma, beta); BN channels carry (scale, shift).
        mul = jnp.concatenate([gamma_in, sc_bn]).reshape(1, C, 1)
        add = jnp.concatenate([beta_in, sh_bn]).reshape(1, C, 1)

        blocks_in = half // trc_u
        out3 = pl.pallas_call(
            _make_unified_kernel(blocks_in, inv_s),
            grid=(N, C // trc_u),
            in_specs=[pl.BlockSpec((1, trc_u, s_pad), lambda n, i: (n, i, 0)),
                      pl.BlockSpec((1, trc_u, 1), lambda n, i: (0, i, 0)),
                      pl.BlockSpec((1, trc_u, 1), lambda n, i: (0, i, 0))],
            out_specs=pl.BlockSpec((1, trc_u, s_pad), lambda n, i: (n, i, 0)),
            out_shape=jax.ShapeDtypeStruct((N, C, s_pad), jnp.float32),
            compiler_params=pltpu.CompilerParams(
                dimension_semantics=("parallel", "parallel"),
                vmem_limit_bytes=VMEM_LIMIT_BYTES),
            cost_estimate=pl.CostEstimate(
                flops=7 * N * C * s_pad, transcendentals=N * half,
                bytes_accessed=4 * (2 * N * C * s_pad + 2 * C)),
        )(x3, mul, add)
    else:
        # --- fallback: two-pass over all channels (~3x traffic) -----------------
        sums, sqs = _run_stats(x3, 0, C, s_pad)              # (N, C) each
        # InstanceNorm half: per-(n, c) stats over S.
        m_in = sums[:, :half] * inv_s
        v_in = jnp.maximum(sqs[:, :half] * inv_s - m_in * m_in, 0.0)
        sc_in = jax.lax.rsqrt(v_in + EPS) * gamma_in[None, :]
        sh_in = beta_in[None, :] - m_in * sc_in
        # BatchNorm half: per-channel stats over (N, S).
        m_bn = jnp.sum(sums[:, half:], axis=0) / (N * S)
        v_bn = jnp.maximum(jnp.sum(sqs[:, half:], axis=0) / (N * S) - m_bn * m_bn, 0.0)
        sc_bn = jax.lax.rsqrt(v_bn + EPS) * gamma_bn
        sh_bn = beta_bn - m_bn * sc_bn
        sc_bn = jnp.broadcast_to(sc_bn[None, :], (N, cb))
        sh_bn = jnp.broadcast_to(sh_bn[None, :], (N, cb))

        scale = jnp.concatenate([sc_in, sc_bn], axis=1).reshape(N, C, 1)
        shift = jnp.concatenate([sh_in, sh_bn], axis=1).reshape(N, C, 1)

        trc = _channel_tile(C, 0, C, cap=256)
        tc = _col_tile(s_pad, trc, NORM_BLOCK_BYTES)
        out3 = pl.pallas_call(
            _norm_kernel,
            grid=(N, C // trc, s_pad // tc),
            in_specs=[pl.BlockSpec((1, trc, tc), lambda n, i, j: (n, i, j)),
                      pl.BlockSpec((1, trc, 1), lambda n, i, j: (n, i, 0)),
                      pl.BlockSpec((1, trc, 1), lambda n, i, j: (n, i, 0))],
            out_specs=pl.BlockSpec((1, trc, tc), lambda n, i, j: (n, i, j)),
            out_shape=jax.ShapeDtypeStruct((N, C, s_pad), jnp.float32),
            compiler_params=pltpu.CompilerParams(
                dimension_semantics=("parallel", "parallel", "parallel"),
                vmem_limit_bytes=VMEM_LIMIT_BYTES),
            cost_estimate=pl.CostEstimate(
                flops=2 * N * C * s_pad, transcendentals=0,
                bytes_accessed=4 * (2 * N * C * s_pad + 2 * N * C)),
        )(x3, scale, shift)

    if s_pad != S:
        out3 = out3[:, :, :S]
    return out3.reshape(N, C, D, H, W)


ibn_forward_jit = jax.jit(ibn_forward)


# ------------------------------ reference -----------------------------------

def reference_ibn(x, gamma_in, beta_in, gamma_bn, beta_bn):
    C = x.shape[1]
    half = int(C * 0.5)
    x1, x2 = x[:, :half], x[:, half:]

    m1 = jnp.mean(x1, axis=(2, 3, 4), keepdims=True)
    v1 = jnp.var(x1, axis=(2, 3, 4), keepdims=True)
    o1 = (x1 - m1) / jnp.sqrt(v1 + EPS)
    o1 = o1 * gamma_in.reshape(1, -1, 1, 1, 1) + beta_in.reshape(1, -1, 1, 1, 1)

    m2 = jnp.mean(x2, axis=(0, 2, 3, 4), keepdims=True)
    v2 = jnp.var(x2, axis=(0, 2, 3, 4), keepdims=True)
    o2 = (x2 - m2) / jnp.sqrt(v2 + EPS)
    o2 = o2 * gamma_bn.reshape(1, -1, 1, 1, 1) + beta_bn.reshape(1, -1, 1, 1, 1)

    return jnp.concatenate([o1, o2], axis=1)


# --------------------------------- main --------------------------------------

def _run_case(key, N, C, D, H, W):
    half = int(C * 0.5)
    ks = jax.random.split(key, 5)
    x = jax.random.normal(ks[0], (N, C, D, H, W), jnp.float32) * 2.0 + 0.5
    gamma_in = 1.0 + 0.1 * jax.random.normal(ks[1], (half,), jnp.float32)
    beta_in = 0.1 * jax.random.normal(ks[2], (half,), jnp.float32)
    gamma_bn = 1.0 + 0.1 * jax.random.normal(ks[3], (C - half,), jnp.float32)
    beta_bn = 0.1 * jax.random.normal(ks[4], (C - half,), jnp.float32)

    out = ibn_forward_jit(x, gamma_in, beta_in, gamma_bn, beta_bn)
    out = jax.block_until_ready(out)

    ref = reference_ibn(x, gamma_in, beta_in, gamma_bn, beta_bn)
    np.testing.assert_allclose(np.asarray(out), np.asarray(ref),
                               rtol=1e-3, atol=1e-3)


if __name__ == "__main__":
    key = jax.random.PRNGKey(0)
    k1, k2 = jax.random.split(key)
    # Fast path: aligned channels & spatial -> BN-only stats + fused IN normalize.
    _run_case(k1, N=2, C=32, D=16, H=16, W=16)
    # Fallback path: unaligned channel split (half=4) and spatial (315 -> pad 384).
    _run_case(k2, N=2, C=8, D=5, H=7, W=9)
    print("KERNEL_OK")
</pallas_src>

<mosaic_0001>
module attributes {stable_mosaic.version = 11 : i64} {
  func.func @kernel(%arg0: i32, %arg1: i32, %arg2: i32, %arg3: i32, %arg4: memref<1x16x4096xf32, #tpu.memory_space<vmem>>, %arg5: memref<1x16x128xf32, #tpu.memory_space<vmem>>, %arg6: memref<1x16x128xf32, #tpu.memory_space<vmem>>) attributes {dimension_semantics = [#tpu.dimension_semantics<parallel>, #tpu.dimension_semantics<parallel>, #tpu.dimension_semantics<parallel>, #tpu.dimension_semantics<arbitrary>], iteration_bounds = array<i64: 1, 2, 1, 1>, scalar_prefetch = 0 : i64, scratch_operands = 0 : i64, tpu.core_type = #tpu.core_type<tc>, window_params = [{transform_indices = @transform_0, window_bounds = array<i64: 1, 16, 4096>}, {transform_indices = @transform_1, window_bounds = array<i64: 1, 16, 128>}, {transform_indices = @transform_2, window_bounds = array<i64: 1, 16, 128>}]} {
    %c0_i32 = arith.constant 0 : i32
    %0 = arith.cmpi eq, %arg3, %c0_i32 : i32
    %1 = arith.extui %0 : i1 to i32
    %c0_i32_0 = arith.constant 0 : i32
    %2 = arith.cmpi ne, %1, %c0_i32_0 : i32
    scf.if %2 {
      %cst = arith.constant 0.000000e+00 : f32
      %135 = vector.broadcast %cst : f32 to vector<1x16x128xf32>
      %c0_77 = arith.constant 0 : index
      %c0_78 = arith.constant 0 : index
      %c0_79 = arith.constant 0 : index
      %136 = vector.load %arg5[%c0_77, %c0_78, %c0_79] : memref<1x16x128xf32, #tpu.memory_space<vmem>>, vector<1x16x128xf32>
      tpu.vector_store %arg5[%c0_77, %c0_78, %c0_79], %135 {strides = array<i32>} : memref<1x16x128xf32, #tpu.memory_space<vmem>>, vector<1x16x128xf32>,
      %cst_80 = arith.constant 0.000000e+00 : f32
      %137 = vector.broadcast %cst_80 : f32 to vector<1x16x128xf32>
      %c0_81 = arith.constant 0 : index
      %c0_82 = arith.constant 0 : index
      %c0_83 = arith.constant 0 : index
      %138 = vector.load %arg6[%c0_81, %c0_82, %c0_83] : memref<1x16x128xf32, #tpu.memory_space<vmem>>, vector<1x16x128xf32>
      tpu.vector_store %arg6[%c0_81, %c0_82, %c0_83], %137 {strides = array<i32>} : memref<1x16x128xf32, #tpu.memory_space<vmem>>, vector<1x16x128xf32>,
    } else {
    }
    %c0 = arith.constant 0 : index
    %c0_1 = arith.constant 0 : index
    %c0_2 = arith.constant 0 : index
    %3 = vector.load %arg4[%c0, %c0_1, %c0_2] : memref<1x16x4096xf32, #tpu.memory_space<vmem>>, vector<1x16x128xf32>
    %4 = arith.mulf %3, %3 : vector<1x16x128xf32>
    %c0_3 = arith.constant 0 : index
    %c0_4 = arith.constant 0 : index
    %c128 = arith.constant 128 : index
    %5 = vector.load %arg4[%c0_3, %c0_4, %c128] : memref<1x16x4096xf32, #tpu.memory_space<vmem>>, vector<1x16x128xf32>
    %6 = arith.addf %3, %5 : vector<1x16x128xf32>
    %7 = arith.mulf %5, %5 : vector<1x16x128xf32>
    %8 = arith.addf %4, %7 : vector<1x16x128xf32>
    %c0_5 = arith.constant 0 : index
    %c0_6 = arith.constant 0 : index
    %c256 = arith.constant 256 : index
    %9 = vector.load %arg4[%c0_5, %c0_6, %c256] : memref<1x16x4096xf32, #tpu.memory_space<vmem>>, vector<1x16x128xf32>
    %10 = arith.addf %6, %9 : vector<1x16x128xf32>
    %11 = arith.mulf %9, %9 : vector<1x16x128xf32>
    %12 = arith.addf %8, %11 : vector<1x16x128xf32>
    %c0_7 = arith.constant 0 : index
    %c0_8 = arith.constant 0 : index
    %c384 = arith.constant 384 : index
    %13 = vector.load %arg4[%c0_7, %c0_8, %c384] : memref<1x16x4096xf32, #tpu.memory_space<vmem>>, vector<1x16x128xf32>
    %14 = arith.addf %10, %13 : vector<1x16x128xf32>
    %15 = arith.mulf %13, %13 : vector<1x16x128xf32>
    %16 = arith.addf %12, %15 : vector<1x16x128xf32>
    %c0_9 = arith.constant 0 : index
    %c0_10 = arith.constant 0 : index
    %c512 = arith.constant 512 : index
    %17 = vector.load %arg4[%c0_9, %c0_10, %c512] : memref<1x16x4096xf32, #tpu.memory_space<vmem>>, vector<1x16x128xf32>
    %18 = arith.addf %14, %17 : vector<1x16x128xf32>
    %19 = arith.mulf %17, %17 : vector<1x16x128xf32>
    %20 = arith.addf %16, %19 : vector<1x16x128xf32>
    %c0_11 = arith.constant 0 : index
    %c0_12 = arith.constant 0 : index
    %c640 = arith.constant 640 : index
    %21 = vector.load %arg4[%c0_11, %c0_12, %c640] : memref<1x16x4096xf32, #tpu.memory_space<vmem>>, vector<1x16x128xf32>
    %22 = arith.addf %18, %21 : vector<1x16x128xf32>
    %23 = arith.mulf %21, %21 : vector<1x16x128xf32>
    %24 = arith.addf %20, %23 : vector<1x16x128xf32>
    %c0_13 = arith.constant 0 : index
    %c0_14 = arith.constant 0 : index
    %c768 = arith.constant 768 : index
    %25 = vector.load %arg4[%c0_13, %c0_14, %c768] : memref<1x16x4096xf32, #tpu.memory_space<vmem>>, vector<1x16x128xf32>
    %26 = arith.addf %22, %25 : vector<1x16x128xf32>
    %27 = arith.mulf %25, %25 : vector<1x16x128xf32>
    %28 = arith.addf %24, %27 : vector<1x16x128xf32>
    %c0_15 = arith.constant 0 : index
    %c0_16 = arith.constant 0 : index
    %c896 = arith.constant 896 : index
    %29 = vector.load %arg4[%c0_15, %c0_16, %c896] : memref<1x16x4096xf32, #tpu.memory_space<vmem>>, vector<1x16x128xf32>
    %30 = arith.addf %26, %29 : vector<1x16x128xf32>
    %31 = arith.mulf %29, %29 : vector<1x16x128xf32>
    %32 = arith.addf %28, %31 : vector<1x16x128xf32>
    %c0_17 = arith.constant 0 : index
    %c0_18 = arith.constant 0 : index
    %c1024 = arith.constant 1024 : index
    %33 = vector.load %arg4[%c0_17, %c0_18, %c1024] : memref<1x16x4096xf32, #tpu.memory_space<vmem>>, vector<1x16x128xf32>
    %34 = arith.addf %30, %33 : vector<1x16x128xf32>
    %35 = arith.mulf %33, %33 : vector<1x16x128xf32>
    %36 = arith.addf %32, %35 : vector<1x16x128xf32>
    %c0_19 = arith.constant 0 : index
    %c0_20 = arith.constant 0 : index
    %c1152 = arith.constant 1152 : index
    %37 = vector.load %arg4[%c0_19, %c0_20, %c1152] : memref<1x16x4096xf32, #tpu.memory_space<vmem>>, vector<1x16x128xf32>
    %38 = arith.addf %34, %37 : vector<1x16x128xf32>
    %39 = arith.mulf %37, %37 : vector<1x16x128xf32>
    %40 = arith.addf %36, %39 : vector<1x16x128xf32>
    %c0_21 = arith.constant 0 : index
    %c0_22 = arith.constant 0 : index
    %c1280 = arith.constant 1280 : index
    %41 = vector.load %arg4[%c0_21, %c0_22, %c1280] : memref<1x16x4096xf32, #tpu.memory_space<vmem>>, vector<1x16x128xf32>
    %42 = arith.addf %38, %41 : vector<1x16x128xf32>
    %43 = arith.mulf %41, %41 : vector<1x16x128xf32>
    %44 = arith.addf %40, %43 : vector<1x16x128xf32>
    %c0_23 = arith.constant 0 : index
    %c0_24 = arith.constant 0 : index
    %c1408 = arith.constant 1408 : index
    %45 = vector.load %arg4[%c0_23, %c0_24, %c1408] : memref<1x16x4096xf32, #tpu.memory_space<vmem>>, vector<1x16x128xf32>
    %46 = arith.addf %42, %45 : vector<1x16x128xf32>
    %47 = arith.mulf %45, %45 : vector<1x16x128xf32>
    %48 = arith.addf %44, %47 : vector<1x16x128xf32>
    %c0_25 = arith.constant 0 : index
    %c0_26 = arith.constant 0 : index
    %c1536 = arith.constant 1536 : index
    %49 = vector.load %arg4[%c0_25, %c0_26, %c1536] : memref<1x16x4096xf32, #tpu.memory_space<vmem>>, vector<1x16x128xf32>
    %50 = arith.addf %46, %49 : vector<1x16x128xf32>
    %51 = arith.mulf %49, %49 : vector<1x16x128xf32>
    %52 = arith.addf %48, %51 : vector<1x16x128xf32>
    %c0_27 = arith.constant 0 : index
    %c0_28 = arith.constant 0 : index
    %c1664 = arith.constant 1664 : index
    %53 = vector.load %arg4[%c0_27, %c0_28, %c1664] : memref<1x16x4096xf32, #tpu.memory_space<vmem>>, vector<1x16x128xf32>
    %54 = arith.addf %50, %53 : vector<1x16x128xf32>
    %55 = arith.mulf %53, %53 : vector<1x16x128xf32>
    %56 = arith.addf %52, %55 : vector<1x16x128xf32>
    %c0_29 = arith.constant 0 : index
    %c0_30 = arith.constant 0 : index
    %c1792 = arith.constant 1792 : index
    %57 = vector.load %arg4[%c0_29, %c0_30, %c1792] : memref<1x16x4096xf32, #tpu.memory_space<vmem>>, vector<1x16x128xf32>
    %58 = arith.addf %54, %57 : vector<1x16x128xf32>
    %59 = arith.mulf %57, %57 : vector<1x16x128xf32>
    %60 = arith.addf %56, %59 : vector<1x16x128xf32>
    %c0_31 = arith.constant 0 : index
    %c0_32 = arith.constant 0 : index
    %c1920 = arith.constant 1920 : index
    %61 = vector.load %arg4[%c0_31, %c0_32, %c1920] : memref<1x16x4096xf32, #tpu.memory_space<vmem>>, vector<1x16x128xf32>
    %62 = arith.addf %58, %61 : vector<1x16x128xf32>
    %63 = arith.mulf %61, %61 : vector<1x16x128xf32>
    %64 = arith.addf %60, %63 : vector<1x16x128xf32>
    %c0_33 = arith.constant 0 : index
    %c0_34 = arith.constant 0 : index
    %c2048 = arith.constant 2048 : index
    %65 = vector.load %arg4[%c0_33, %c0_34, %c2048] : memref<1x16x4096xf32, #tpu.memory_space<vmem>>, vector<1x16x128xf32>
    %66 = arith.addf %62, %65 : vector<1x16x128xf32>
    %67 = arith.mulf %65, %65 : vector<1x16x128xf32>
    %68 = arith.addf %64, %67 : vector<1x16x128xf32>
    %c0_35 = arith.constant 0 : index
    %c0_36 = arith.constant 0 : index
    %c2176 = arith.constant 2176 : index
    %69 = vector.load %arg4[%c0_35, %c0_36, %c2176] : memref<1x16x4096xf32, #tpu.memory_space<vmem>>, vector<1x16x128xf32>
    %70 = arith.addf %66, %69 : vector<1x16x128xf32>
    %71 = arith.mulf %69, %69 : vector<1x16x128xf32>
    %72 = arith.addf %68, %71 : vector<1x16x128xf32>
    %c0_37 = arith.constant 0 : index
    %c0_38 = arith.constant 0 : index
    %c2304 = arith.constant 2304 : index
    %73 = vector.load %arg4[%c0_37, %c0_38, %c2304] : memref<1x16x4096xf32, #tpu.memory_space<vmem>>, vector<1x16x128xf32>
    %74 = arith.addf %70, %73 : vector<1x16x128xf32>
    %75 = arith.mulf %73, %73 : vector<1x16x128xf32>
    %76 = arith.addf %72, %75 : vector<1x16x128xf32>
    %c0_39 = arith.constant 0 : index
    %c0_40 = arith.constant 0 : index
    %c2432 = arith.constant 2432 : index
    %77 = vector.load %arg4[%c0_39, %c0_40, %c2432] : memref<1x16x4096xf32, #tpu.memory_space<vmem>>, vector<1x16x128xf32>
    %78 = arith.addf %74, %77 : vector<1x16x128xf32>
    %79 = arith.mulf %77, %77 : vector<1x16x128xf32>
    %80 = arith.addf %76, %79 : vector<1x16x128xf32>
    %c0_41 = arith.constant 0 : index
    %c0_42 = arith.constant 0 : index
    %c2560 = arith.constant 2560 : index
    %81 = vector.load %arg4[%c0_41, %c0_42, %c2560] : memref<1x16x4096xf32, #tpu.memory_space<vmem>>, vector<1x16x128xf32>
    %82 = arith.addf %78, %81 : vector<1x16x128xf32>
    %83 = arith.mulf %81, %81 : vector<1x16x128xf32>
    %84 = arith.addf %80, %83 : vector<1x16x128xf32>
    %c0_43 = arith.constant 0 : index
    %c0_44 = arith.constant 0 : index
    %c2688 = arith.constant 2688 : index
    %85 = vector.load %arg4[%c0_43, %c0_44, %c2688] : memref<1x16x4096xf32, #tpu.memory_space<vmem>>, vector<1x16x128xf32>
    %86 = arith.addf %82, %85 : vector<1x16x128xf32>
    %87 = arith.mulf %85, %85 : vector<1x16x128xf32>
    %88 = arith.addf %84, %87 : vector<1x16x128xf32>
    %c0_45 = arith.constant 0 : index
    %c0_46 = arith.constant 0 : index
    %c2816 = arith.constant 2816 : index
    %89 = vector.load %arg4[%c0_45, %c0_46, %c2816] : memref<1x16x4096xf32, #tpu.memory_space<vmem>>, vector<1x16x128xf32>
    %90 = arith.addf %86, %89 : vector<1x16x128xf32>
    %91 = arith.mulf %89, %89 : vector<1x16x128xf32>
    %92 = arith.addf %88, %91 : vector<1x16x128xf32>
    %c0_47 = arith.constant 0 : index
    %c0_48 = arith.constant 0 : index
    %c2944 = arith.constant 2944 : index
    %93 = vector.load %arg4[%c0_47, %c0_48, %c2944] : memref<1x16x4096xf32, #tpu.memory_space<vmem>>, vector<1x16x128xf32>
    %94 = arith.addf %90, %93 : vector<1x16x128xf32>
    %95 = arith.mulf %93, %93 : vector<1x16x128xf32>
    %96 = arith.addf %92, %95 : vector<1x16x128xf32>
    %c0_49 = arith.constant 0 : index
    %c0_50 = arith.constant 0 : index
    %c3072 = arith.constant 3072 : index
    %97 = vector.load %arg4[%c0_49, %c0_50, %c3072] : memref<1x16x4096xf32, #tpu.memory_space<vmem>>, vector<1x16x128xf32>
    %98 = arith.addf %94, %97 : vector<1x16x128xf32>
    %99 = arith.mulf %97, %97 : vector<1x16x128xf32>
    %100 = arith.addf %96, %99 : vector<1x16x128xf32>
    %c0_51 = arith.constant 0 : index
    %c0_52 = arith.constant 0 : index
    %c3200 = arith.constant 3200 : index
    %101 = vector.load %arg4[%c0_51, %c0_52, %c3200] : memref<1x16x4096xf32, #tpu.memory_space<vmem>>, vector<1x16x128xf32>
    %102 = arith.addf %98, %101 : vector<1x16x128xf32>
    %103 = arith.mulf %101, %101 : vector<1x16x128xf32>
    %104 = arith.addf %100, %103 : vector<1x16x128xf32>
    %c0_53 = arith.constant 0 : index
    %c0_54 = arith.constant 0 : index
    %c3328 = arith.constant 3328 : index
    %105 = vector.load %arg4[%c0_53, %c0_54, %c3328] : memref<1x16x4096xf32, #tpu.memory_space<vmem>>, vector<1x16x128xf32>
    %106 = arith.addf %102, %105 : vector<1x16x128xf32>
    %107 = arith.mulf %105, %105 : vector<1x16x128xf32>
    %108 = arith.addf %104, %107 : vector<1x16x128xf32>
    %c0_55 = arith.constant 0 : index
    %c0_56 = arith.constant 0 : index
    %c3456 = arith.constant 3456 : index
    %109 = vector.load %arg4[%c0_55, %c0_56, %c3456] : memref<1x16x4096xf32, #tpu.memory_space<vmem>>, vector<1x16x128xf32>
    %110 = arith.addf %106, %109 : vector<1x16x128xf32>
    %111 = arith.mulf %109, %109 : vector<1x16x128xf32>
    %112 = arith.addf %108, %111 : vector<1x16x128xf32>
    %c0_57 = arith.constant 0 : index
    %c0_58 = arith.constant 0 : index
    %c3584 = arith.constant 3584 : index
    %113 = vector.load %arg4[%c0_57, %c0_58, %c3584] : memref<1x16x4096xf32, #tpu.memory_space<vmem>>, vector<1x16x128xf32>
    %114 = arith.addf %110, %113 : vector<1x16x128xf32>
    %115 = arith.mulf %113, %113 : vector<1x16x128xf32>
    %116 = arith.addf %112, %115 : vector<1x16x128xf32>
    %c0_59 = arith.constant 0 : index
    %c0_60 = arith.constant 0 : index
    %c3712 = arith.constant 3712 : index
    %117 = vector.load %arg4[%c0_59, %c0_60, %c3712] : memref<1x16x4096xf32, #tpu.memory_space<vmem>>, vector<1x16x128xf32>
    %118 = arith.addf %114, %117 : vector<1x16x128xf32>
    %119 = arith.mulf %117, %117 : vector<1x16x128xf32>
    %120 = arith.addf %116, %119 : vector<1x16x128xf32>
    %c0_61 = arith.constant 0 : index
    %c0_62 = arith.constant 0 : index
    %c3840 = arith.constant 3840 : index
    %121 = vector.load %arg4[%c0_61, %c0_62, %c3840] : memref<1x16x4096xf32, #tpu.memory_space<vmem>>, vector<1x16x128xf32>
    %122 = arith.addf %118, %121 : vector<1x16x128xf32>
    %123 = arith.mulf %121, %121 : vector<1x16x128xf32>
    %124 = arith.addf %120, %123 : vector<1x16x128xf32>
    %c0_63 = arith.constant 0 : index
    %c0_64 = arith.constant 0 : index
    %c3968 = arith.constant 3968 : index
    %125 = vector.load %arg4[%c0_63, %c0_64, %c3968] : memref<1x16x4096xf32, #tpu.memory_space<vmem>>, vector<1x16x128xf32>
    %126 = arith.addf %122, %125 : vector<1x16x128xf32>
    %127 = arith.mulf %125, %125 : vector<1x16x128xf32>
    %128 = arith.addf %124, %127 : vector<1x16x128xf32>
    %c0_65 = arith.constant 0 : index
    %c0_66 = arith.constant 0 : index
    %c0_67 = arith.constant 0 : index
    %129 = vector.load %arg5[%c0_65, %c0_66, %c0_67] : memref<1x16x128xf32, #tpu.memory_space<vmem>>, vector<1x16x128xf32>
    %130 = arith.addf %129, %126 : vector<1x16x128xf32>
    %c0_68 = arith.constant 0 : index
    %c0_69 = arith.constant 0 : index
    %c0_70 = arith.constant 0 : index
    %131 = vector.load %arg5[%c0_68, %c0_69, %c0_70] : memref<1x16x128xf32, #tpu.memory_space<vmem>>, vector<1x16x128xf32>
    tpu.vector_store %arg5[%c0_68, %c0_69, %c0_70], %130 {strides = array<i32>} : memref<1x16x128xf32, #tpu.memory_space<vmem>>, vector<1x16x128xf32>,
    %c0_71 = arith.constant 0 : index
    %c0_72 = arith.constant 0 : index
    %c0_73 = arith.constant 0 : index
    %132 = vector.load %arg6[%c0_71, %c0_72, %c0_73] : memref<1x16x128xf32, #tpu.memory_space<vmem>>, vector<1x16x128xf32>
    %133 = arith.addf %132, %128 : vector<1x16x128xf32>
    %c0_74 = arith.constant 0 : index
    %c0_75 = arith.constant 0 : index
    %c0_76 = arith.constant 0 : index
    %134 = vector.load %arg6[%c0_74, %c0_75, %c0_76] : memref<1x16x128xf32, #tpu.memory_space<vmem>>, vector<1x16x128xf32>
    tpu.vector_store %arg6[%c0_74, %c0_75, %c0_76], %133 {strides = array<i32>} : memref<1x16x128xf32, #tpu.memory_space<vmem>>, vector<1x16x128xf32>,
    return
  }
  func.func @transform_0(%arg0: i32, %arg1: i32, %arg2: i32, %arg3: i32) -> (i32, i32, i32) {
    %c1_i32 = arith.constant 1 : i32
    %0 = arith.addi %c1_i32, %arg2 : i32
    %c1_i32_0 = arith.constant 1 : i32
    %1 = arith.muli %arg0, %c1_i32_0 : i32
    %2 = arith.addi %1, %arg3 : i32
    %c0_i32 = arith.constant 0 : i32
    return %arg1, %0, %2 : i32, i32, i32
  }
  func.func @transform_1(%arg0: i32, %arg1: i32, %arg2: i32, %arg3: i32) -> (i32, i32, i32) {
    %c2_i32 = arith.constant 2 : i32
    %0 = arith.muli %arg0, %c2_i32 : i32
    %1 = arith.addi %0, %arg1 : i32
    %c0_i32 = arith.constant 0 : i32
    %c0_i32_0 = arith.constant 0 : i32
    return %1, %arg2, %c0_i32 : i32, i32, i32
  }
  func.func @transform_2(%arg0: i32, %arg1: i32, %arg2: i32, %arg3: i32) -> (i32, i32, i32) {
    %c2_i32 = arith.constant 2 : i32
    %0 = arith.muli %arg0, %c2_i32 : i32
    %1 = arith.addi %0, %arg1 : i32
    %c0_i32 = arith.constant 0 : i32
    %c0_i32_0 = arith.constant 0 : i32
    return %1, %arg2, %c0_i32 : i32, i32, i32
  }
}

module attributes {stable_mosaic.version = 11 : i64} {
  func.func @kernel(%arg0: i32, %arg1: i32, %arg2: memref<1x16x4096xf32, #tpu.memory_space<vmem>>, %arg3: memref<1x16x1xf32, #tpu.memory_space<vmem>>, %arg4: memref<1x16x1xf32, #tpu.memory_space<vmem>>, %arg5: memref<1x16x4096xf32, #tpu.memory_space<vmem>>) attributes {dimension_semantics = [#tpu.dimension_semantics<parallel>, #tpu.dimension_semantics<parallel>], iteration_bounds = array<i64: 2, 2>, scalar_prefetch = 0 : i64, scratch_operands = 0 : i64, tpu.core_type = #tpu.core_type<tc>, window_params = [{transform_indices = @transform_0, window_bounds = array<i64: 1, 16, 4096>}, {transform_indices = @transform_1, window_bounds = array<i64: 1, 16, 1>}, {transform_indices = @transform_2, window_bounds = array<i64: 1, 16, 1>}, {transform_indices = @transform_3, window_bounds = array<i64: 1, 16, 4096>}]} {
    %c0 = arith.constant 0 : index
    %c0_0 = arith.constant 0 : index
    %c0_1 = arith.constant 0 : index
    %0 = vector.load %arg2[%c0, %c0_0, %c0_1] : memref<1x16x4096xf32, #tpu.memory_space<vmem>>, vector<1x16x4096xf32>
    %c1_i32 = arith.constant 1 : i32
    %1 = arith.cmpi slt, %arg1, %c1_i32 : i32
    %2 = arith.extui %1 : i1 to i32
    %c0_i32 = arith.constant 0 : i32
    %3 = arith.cmpi ne, %2, %c0_i32 : i32
    scf.if %3 {
      %cst = arith.constant dense<0.000000e+00> : vector<1x16xf32>
      %7 = vector.multi_reduction <add>, %0, %cst [2] : vector<1x16x4096xf32> to vector<1x16xf32>
      %8 = vector.shape_cast %7 : vector<1x16xf32> to vector<1x16x1xf32>
      %9 = arith.mulf %0, %0 : vector<1x16x4096xf32>
      %cst_4 = arith.constant dense<0.000000e+00> : vector<1x16xf32>
      %10 = vector.multi_reduction <add>, %9, %cst_4 [2] : vector<1x16x4096xf32> to vector<1x16xf32>
      %11 = vector.shape_cast %10 : vector<1x16xf32> to vector<1x16x1xf32>
      %cst_5 = arith.constant 2.44140625E-4 : f32
      %12 = vector.broadcast %cst_5 : f32 to vector<1x16x1xf32>
      %13 = arith.mulf %8, %12 : vector<1x16x1xf32>
      %cst_6 = arith.constant 2.44140625E-4 : f32
      %14 = vector.broadcast %cst_6 : f32 to vector<1x16x1xf32>
      %15 = arith.mulf %11, %14 : vector<1x16x1xf32>
      %16 = arith.mulf %13, %13 : vector<1x16x1xf32>
      %17 = arith.subf %15, %16 : vector<1x16x1xf32>
      %cst_7 = arith.constant 0.000000e+00 : f32
      %18 = vector.broadcast %cst_7 : f32 to vector<1x16x1xf32>
      %19 = arith.maximumf %17, %18 : vector<1x16x1xf32>
      %cst_8 = arith.constant 9.99999974E-6 : f32
      %20 = vector.broadcast %cst_8 : f32 to vector<1x16x1xf32>
      %21 = arith.addf %19, %20 : vector<1x16x1xf32>
      %22 = math.rsqrt %21 : vector<1x16x1xf32>
      %c0_9 = arith.constant 0 : index
      %c0_10 = arith.constant 0 : index
      %c0_11 = arith.constant 0 : index
      %23 = vector.load %arg3[%c0_9, %c0_10, %c0_11] : memref<1x16x1xf32, #tpu.memory_space<vmem>>, vector<1x16x1xf32>
      %24 = arith.mulf %22, %23 : vector<1x16x1xf32>
      %c0_12 = arith.constant 0 : index
      %c0_13 = arith.constant 0 : index
      %c0_14 = arith.constant 0 : index
      %25 = vector.load %arg4[%c0_12, %c0_13, %c0_14] : memref<1x16x1xf32, #tpu.memory_space<vmem>>, vector<1x16x1xf32>
      %26 = arith.mulf %13, %24 : vector<1x16x1xf32>
      %27 = arith.subf %25, %26 : vector<1x16x1xf32>
      %28 = vector.broadcast %24 : vector<1x16x1xf32> to vector<1x16x4096xf32>
      %29 = arith.mulf %0, %28 : vector<1x16x4096xf32>
      %30 = vector.broadcast %27 : vector<1x16x1xf32> to vector<1x16x4096xf32>
      %31 = arith.addf %29, %30 : vector<1x16x4096xf32>
      %c0_15 = arith.constant 0 : index
      %c0_16 = arith.constant 0 : index
      %c0_17 = arith.constant 0 : index
      %32 = vector.load %arg5[%c0_15, %c0_16, %c0_17] : memref<1x16x4096xf32, #tpu.memory_space<vmem>>, vector<1x16x4096xf32>
      tpu.vector_store %arg5[%c0_15, %c0_16, %c0_17], %31 {strides = array<i32>} : memref<1x16x4096xf32, #tpu.memory_space<vmem>>, vector<1x16x4096xf32>,
    } else {
    }
    %c1_i32_2 = arith.constant 1 : i32
    %4 = arith.cmpi sge, %arg1, %c1_i32_2 : i32
    %5 = arith.extui %4 : i1 to i32
    %c0_i32_3 = arith.constant 0 : i32
    %6 = arith.cmpi ne, %5, %c0_i32_3 : i32
    scf.if %6 {
      %c0_4 = arith.constant 0 : index
      %c0_5 = arith.constant 0 : index
      %c0_6 = arith.constant 0 : index
      %7 = vector.load %arg3[%c0_4, %c0_5, %c0_6] : memref<1x16x1xf32, #tpu.memory_space<vmem>>, vector<1x16x1xf32>
      %8 = vector.broadcast %7 : vector<1x16x1xf32> to vector<1x16x4096xf32>
      %9 = arith.mulf %0, %8 : vector<1x16x4096xf32>
      %c0_7 = arith.constant 0 : index
      %c0_8 = arith.constant 0 : index
      %c0_9 = arith.constant 0 : index
      %10 = vector.load %arg4[%c0_7, %c0_8, %c0_9] : memref<1x16x1xf32, #tpu.memory_space<vmem>>, vector<1x16x1xf32>
      %11 = vector.broadcast %10 : vector<1x16x1xf32> to vector<1x16x4096xf32>
      %12 = arith.addf %9, %11 : vector<1x16x4096xf32>
      %c0_10 = arith.constant 0 : index
      %c0_11 = arith.constant 0 : index
      %c0_12 = arith.constant 0 : index
      %13 = vector.load %arg5[%c0_10, %c0_11, %c0_12] : memref<1x16x4096xf32, #tpu.memory_space<vmem>>, vector<1x16x4096xf32>
      tpu.vector_store %arg5[%c0_10, %c0_11, %c0_12], %12 {strides = array<i32>} : memref<1x16x4096xf32, #tpu.memory_space<vmem>>, vector<1x16x4096xf32>,
    } else {
    }
    return
  }
  func.func @transform_0(%arg0: i32, %arg1: i32) -> (i32, i32, i32) {
    %c0_i32 = arith.constant 0 : i32
    %c0_i32_0 = arith.constant 0 : i32
    return %arg0, %arg1, %c0_i32 : i32, i32, i32
  }
  func.func @transform_1(%arg0: i32, %arg1: i32) -> (i32, i32, i32) {
    %c0_i32 = arith.constant 0 : i32
    %c0_i32_0 = arith.constant 0 : i32
    %c0_i32_1 = arith.constant 0 : i32
    return %c0_i32, %arg1, %c0_i32_0 : i32, i32, i32
  }
  func.func @transform_2(%arg0: i32, %arg1: i32) -> (i32, i32, i32) {
    %c0_i32 = arith.constant 0 : i32
    %c0_i32_0 = arith.constant 0 : i32
    %c0_i32_1 = arith.constant 0 : i32
    return %c0_i32, %arg1, %c0_i32_0 : i32, i32, i32
  }
  func.func @transform_3(%arg0: i32, %arg1: i32) -> (i32, i32, i32) {
    %c0_i32 = arith.constant 0 : i32
    %c0_i32_0 = arith.constant 0 : i32
    return %arg0, %arg1, %c0_i32 : i32, i32, i32
  }
}

</mosaic_0001>

<llo_original>
// kernel: ibn_forward.2
$region0: #{ibn_forward.2}
  #allocation0 [shape = 'u32[]', space=smem, size = 0x4, offset = 0x4, fixed_abs, tag = 'smem constant byte address 0x4 - core index']
  #allocation1 [shape = 'u32[144,128]{1,0:T(1,128)}', space=vmem, size = 0x12000, scoped, tag = 'internal scratch']
  %s0 = inlined_call_operand.vmem [shape: f32[2,32,4096], index: 0, kind: input, shape index: {}]
  %s1 = inlined_call_operand.vmem [shape: f32[2,16,128], index: 1, kind: output, shape index: {0}]
  %s2 = inlined_call_operand.vmem [shape: f32[2,16,128], index: 2, kind: output, shape index: {1}]
  %3 = xla_tuple %s1, %s2
  %s4 = sld [smem:[#allocation0]]
  $region49: #{ibn_forward.2} parent=0
    _
  %s6 = ssub.s32 1, %s4
  %s7 = scalar_select 0, %s6, %s4
  loop: start=0, step=1, limit=4
  $region2: #{ibn_forward.2} parent=0 // loop_pre_header
    _
  $region3: #{ibn_forward.2} parent=0 // loop_header
    %s9 = sphi 0, %s13
    %p10 = scmp.ge.s32.totalorder %s9, 4
    %s16 = sphi 0, %s42
    %s17 = sphi 0, %s38
    %s18 = sphi 0, %s34
    %s19 = sphi 0, %s30
    %s20 = sphi 0, %s16
    %s21 = sphi 0, %s17
    %s22 = sphi 0, %s18
    %s23 = sphi 0, %s19
    %s24 = sphi 0, %s20
    %s25 = sphi 0, %s21
    %s26 = sphi 0, %s22
    %s27 = sphi 0, %s23
    %s53 = sphi 0, %s55
    %s56 = sphi 0, %s53
    %s57 = sphi 0, %s56
    %s73 = sphi 0, %s57
    %s85 = sphi 0, %s87
    %s88 = sphi 0, %s85
    %s89 = sphi 0, %s88
    %s105 = sphi 0, %s89
    %s117 = sphi 0, %s119
    %s120 = sphi 0, %s117
    %s121 = sphi 0, %s120
    %s137 = sphi 0, %s121
  $region4: #{ibn_forward.2} parent=0 // loop_header_branch
    %12 = sbr.rel (%p10) target = $region8
  $region5: #{ibn_forward.2} parent=0 // loop_body
    %s14 = ssub.s32 %s9, 1
    %s15 = ssub.s32 %s9, 2
    %s28 = sadd.s32 1, %s19
    %p29 = scmp.ge.s32.totalorder %s28, 1
    %s30 = scalar_select %p29, 0, %s28
    %s31 = sadd.s32 1, %s18
    %s32 = scalar_select %p29, %s31, %s18
    %p33 = scmp.ge.s32.totalorder %s32, 1
    %s34 = scalar_select %p33, 0, %s32
    %s35 = sadd.s32 1, %s17
    %s36 = scalar_select %p33, %s35, %s17
    %p37 = scmp.ge.s32.totalorder %s36, 2
    %s38 = scalar_select %p37, 0, %s36
    %s39 = sadd.s32 1, %s16
    %s40 = scalar_select %p37, %s39, %s16
    %p41 = scmp.ge.s32.totalorder %s40, 1
    %s42 = scalar_select %p41, 0, %s40
    %s43 = sadd.s32 %s18, 1
    %s44 = sadd.s32 %s16, %s19
    %s45 = sadd.s32 %s34, 1
    %s46 = sadd.s32 %s42, %s30
    %s47 = ssub.s32 %s17, %s38
    %s48 = ssub.s32 %s43, %s45
    %s49 = sor.u32 %s47, %s48
    %s50 = ssub.s32 %s44, %s46
    %s51 = sor.u32 %s49, %s50
    %p52 = scmp.eq.s32.totalorder %s51, 0
    %s54 = sadd.s32 %s53, 1
    %s55 = scalar_select %p52, %s53, %s54
    %p58 = pneg %p52
    %p59 = scmp.eq.s32.totalorder %s9, 1
    %p60 = por %p58, %p59
    %p61 = scmp.ne.s32.totalorder %s53, %s56
    %p62 = scmp.eq.s32.totalorder %s9, 0
    %p63 = por %p61, %p62
    %p64 = scmp.ne.s32.totalorder %s53, %s56
    %p65 = scmp.eq.s32.totalorder %s14, 1
    %p66 = por %p64, %p65
    %p67 = scmp.ne.s32.totalorder %s56, %s57
    %p68 = scmp.eq.s32.totalorder %s14, 0
    %p69 = por %p67, %p68
    %p70 = scmp.ne.s32.totalorder %s56, %s57
    %p71 = scmp.eq.s32.totalorder %s15, 1
    %p72 = por %p70, %p71
    %p74 = scmp.ne.s32.totalorder %s57, %s73
    %p75 = scmp.eq.s32.totalorder %s15, 0
    %p76 = por %p74, %p75
    %s77 = smul.u32 %s16, 2
    %s78 = sadd.s32 %s77, %s17
    %s79 = smul.u32 %s42, 2
    %s80 = sadd.s32 %s79, %s38
    %s81 = ssub.s32 %s78, %s80
    %s82 = ssub.s32 %s18, %s34
    %s83 = sor.u32 %s81, %s82
    %p84 = scmp.eq.s32.totalorder %s83, 0
    %s86 = sadd.s32 %s85, 1
    %s87 = scalar_select %p84, %s85, %s86
    %p90 = pneg %p84
    %p91 = scmp.eq.s32.totalorder %s9, 1
    %p92 = por %p90, %p91
    %p93 = scmp.ne.s32.totalorder %s85, %s88
    %p94 = scmp.eq.s32.totalorder %s9, 0
    %p95 = por %p93, %p94
    %p96 = scmp.ne.s32.totalorder %s85, %s88
    %p97 = scmp.eq.s32.totalorder %s14, 1
    %p98 = por %p96, %p97
    %p99 = scmp.ne.s32.totalorder %s88, %s89
    %p100 = scmp.eq.s32.totalorder %s14, 0
    %p101 = por %p99, %p100
    %p102 = scmp.ne.s32.totalorder %s88, %s89
    %p103 = scmp.eq.s32.totalorder %s15, 1
    %p104 = por %p102, %p103
    %p106 = scmp.ne.s32.totalorder %s89, %s105
    %p107 = scmp.eq.s32.totalorder %s15, 0
    %p108 = por %p106, %p107
    %s109 = smul.u32 %s16, 2
    %s110 = sadd.s32 %s109, %s17
    %s111 = smul.u32 %s42, 2
    %s112 = sadd.s32 %s111, %s38
    %s113 = ssub.s32 %s110, %s112
    %s114 = ssub.s32 %s18, %s34
    %s115 = sor.u32 %s113, %s114
    %p116 = scmp.eq.s32.totalorder %s115, 0
    %s118 = sadd.s32 %s117, 1
    %s119 = scalar_select %p116, %s117, %s118
    %p122 = pneg %p116
    %p123 = scmp.eq.s32.totalorder %s9, 1
    %p124 = por %p122, %p123
    %p125 = scmp.ne.s32.totalorder %s117, %s120
    %p126 = scmp.eq.s32.totalorder %s9, 0
    %p127 = por %p125, %p126
    %p128 = scmp.ne.s32.totalorder %s117, %s120
    %p129 = scmp.eq.s32.totalorder %s14, 1
    %p130 = por %p128, %p129
    %p131 = scmp.ne.s32.totalorder %s120, %s121
    %p132 = scmp.eq.s32.totalorder %s14, 0
    %p133 = por %p131, %p132
    %p134 = scmp.ne.s32.totalorder %s120, %s121
    %p135 = scmp.eq.s32.totalorder %s15, 1
    %p136 = por %p134, %p135
    %p138 = scmp.ne.s32.totalorder %s121, %s137
    %p139 = scmp.eq.s32.totalorder %s15, 0
    %p140 = por %p138, %p139
    %p141 = scmp.le.s32.totalorder 1, %s9
    %p142 = scmp.lt.s32.totalorder %s9, 3
    %p143 = pnand %p141, %p142
    %p144 = pneg %p143
    // Predicated region
    $region9: #{ibn_forward.2} parent=5 // pred_check
      _
    $region10: #{ibn_forward.2} parent=5 // pred_check_branch
      %146 = sbr.rel (%p143) target = $region12
    $region11: #{ibn_forward.2} parent=5 // pred_region
      %s147 = ssub.s32 %s9, 1
    $region12: #{ibn_forward.2} parent=5 // pred_fallthru
      _
    %p148 = scmp.lt.s32.totalorder %s9, 2
    // Predicated region
    $region13: #{ibn_forward.2} parent=5 // pred_check
      %p149 = pneg %p148
    $region14: #{ibn_forward.2} parent=5 // pred_check_branch
      %151 = sbr.rel (%p149) target = $region16
    $region15: #{ibn_forward.2} parent=5 // pred_region
      // Predicated region
      $region17: #{ibn_forward.2} parent=15 // pred_check
        %p152 = pneg %p63
      $region18: #{ibn_forward.2} parent=15 // pred_check_branch
        %154 = sbr.rel (%p152) target = $region20
      $region19: #{ibn_forward.2} parent=15 // pred_region
        %s155 = sadd.s32 %s18, 1
        %s156 = sadd.s32 %s16, %s19
        %s157 = smul.u32 2, %s155
        %s158 = smul.u32 32, %s156
        %p159 = scmp.lt.s32.totalorder %s17, 1
        %s160 = scalar_select %p159, %s17, 1
        %p161 = scmp.lt.s32.totalorder %s157, 3
        %s162 = scalar_select %p161, %s157, 3
        %p163 = scmp.lt.s32.totalorder %s158, 31
        %s164 = scalar_select %p163, %s158, 31
        %s165 = smul.addr %s162, 32
        %s166 = sadd.s32 %s164, %s165
        %s167 = smul.addr %s160, 128
        %s168 = sadd.s32 %s166, %s167
        %s169 = smul.addr %s168, 8
        %s170 = scalar_lea.vmem %s0, %s169
        %s171 = sadd.s32 %s18, 1
        %s172 = sadd.s32 %s16, %s19
        %s173 = smul.u32 2, %s171
        %s174 = smul.u32 32, %s172
      $region20: #{ibn_forward.2} parent=15 // pred_fallthru
        _
    $region16: #{ibn_forward.2} parent=5 // pred_fallthru
      _
    %p175 = scmp.le.s32.totalorder 1, %s9
    %p176 = scmp.lt.s32.totalorder %s9, 3
    %p177 = pnand %p175, %p176
    %p178 = pneg %p177
    // Predicated region
    $region21: #{ibn_forward.2} parent=5 // pred_check
      _
    $region22: #{ibn_forward.2} parent=5 // pred_check_branch
      %180 = sbr.rel (%p177) target = $region24
    $region23: #{ibn_forward.2} parent=5 // pred_region
      %s181 = ssub.s32 %s9, 1
      %s182 = sadd.s32 %s22, 1
      %s183 = sadd.s32 %s20, %s23
      %s184 = smul.u32 2, %s182
      %s185 = smul.u32 32, %s183
      %p186 = scmp.lt.s32.totalorder %s21, 1
      %s187 = scalar_select %p186, %s21, 1
      %p188 = scmp.lt.s32.totalorder %s184, 3
      %s189 = scalar_select %p188, %s184, 3
      %p190 = scmp.lt.s32.totalorder %s185, 31
      %s191 = scalar_select %p190, %s185, 31
      %s192 = smul.addr %s189, 32
      %s193 = sadd.s32 %s191, %s192
      %s194 = smul.addr %s187, 128
      %s195 = sadd.s32 %s193, %s194
      %s196 = smul.addr %s195, 8
      %s197 = scalar_lea.vmem %s0, %s196
      %p198 = pneg %p69
      %p199 = pneg %p66
      %p200 = pneg %p101
      %p201 = pneg %p98
      %s202 = smul.u32 %s20, 2
      %s203 = sadd.s32 %s202, %s21
      %s204 = smul.u32 2, %s22
      %p205 = scmp.lt.s32.totalorder %s203, 1
      %s206 = scalar_select %p205, %s203, 1
      %p207 = scmp.lt.s32.totalorder %s204, 1
      %s208 = scalar_select %p207, %s204, 1
      %s209 = smul.addr %s206, 2
      %s210 = sadd.s32 %s208, %s209
      %s211 = smul.addr %s210, 8
      %s212 = scalar_lea.vmem %s1, %s211
      %p213 = pneg %p133
      %p214 = pneg %p130
      %s215 = smul.u32 %s20, 2
      %s216 = sadd.s32 %s215, %s21
      %s217 = smul.u32 2, %s22
      %p218 = scmp.lt.s32.totalorder %s216, 1
      %s219 = scalar_select %p218, %s216, 1
      %p220 = scmp.lt.s32.totalorder %s217, 1
      %s221 = scalar_select %p220, %s217, 1
      %s222 = smul.addr %s219, 2
      %s223 = sadd.s32 %s221, %s222
      %s224 = smul.addr %s223, 8
      %s225 = scalar_lea.vmem %s2, %s224
      %s226 = sadd.s32 %s22, 1
      %s227 = sadd.s32 %s20, %s23
      %s228 = smul.u32 2, %s226
      %s229 = smul.u32 32, %s227
      %p230 = scmp.lt.s32.totalorder %s21, 1
      %s231 = scalar_select %p230, %s21, 1
      %p232 = scmp.lt.s32.totalorder %s228, 3
      %s233 = scalar_select %p232, %s228, 3
      %p234 = scmp.lt.s32.totalorder %s229, 31
      %s235 = scalar_select %p234, %s229, 31
      %s236 = smul.addr %s233, 32
      %s237 = sadd.s32 %s235, %s236
      %s238 = smul.addr %s231, 128
      %s239 = sadd.s32 %s237, %s238
      %s240 = smul.addr %s239, 8
      %s241 = scalar_lea.vmem %s0, %s240
      %s242 = sadd.s32 %s22, 1
      %s243 = sadd.s32 %s20, %s23
      %s244 = smul.u32 2, %s242
      %s245 = smul.u32 32, %s243
      %s246 = smul.u32 %s20, 2
      %s247 = sadd.s32 %s246, %s21
      %s248 = smul.u32 2, %s22
      %p249 = scmp.lt.s32.totalorder %s247, 1
      %s250 = scalar_select %p249, %s247, 1
      %p251 = scmp.lt.s32.totalorder %s248, 1
      %s252 = scalar_select %p251, %s248, 1
      %s253 = smul.addr %s250, 2
      %s254 = sadd.s32 %s252, %s253
      %s255 = smul.addr %s254, 8
      %s256 = scalar_lea.vmem %s1, %s255
      %s257 = smul.u32 %s20, 2
      %s258 = sadd.s32 %s257, %s21
      %s259 = smul.u32 2, %s22
      %s260 = smul.u32 %s20, 2
      %s261 = sadd.s32 %s260, %s21
      %s262 = smul.u32 2, %s22
      %p263 = scmp.lt.s32.totalorder %s261, 1
      %s264 = scalar_select %p263, %s261, 1
      %p265 = scmp.lt.s32.totalorder %s262, 1
      %s266 = scalar_select %p265, %s262, 1
      %s267 = smul.addr %s264, 2
      %s268 = sadd.s32 %s266, %s267
      %s269 = smul.addr %s268, 8
      %s270 = scalar_lea.vmem %s2, %s269
      %s271 = smul.u32 %s20, 2
      %s272 = sadd.s32 %s271, %s21
      %s273 = smul.u32 2, %s22
      %p274 = scmp.eq.s32.totalorder %s23, 0
      // Predicated region
      $region25: #{ibn_forward.2} parent=23 // pred_check
        %p275 = pneg %p274
      $region26: #{ibn_forward.2} parent=23 // pred_check_branch
        %277 = sbr.rel (%p275) target = $region28
      $region27: #{ibn_forward.2} parent=23 // pred_region
        %278 = vst [vmem:[%s256] sm:$0xff] 0.0
        %279 = vst [vmem:[%s256 + $0x8] sm:$0xff] 0.0
        %280 = vst [vmem:[%s270] sm:$0xff] 0.0
        %281 = vst [vmem:[%s270 + $0x8] sm:$0xff] 0.0
      $region28: #{ibn_forward.2} parent=23 // pred_fallthru
        _
      %v282 = vld [vmem:[%s241] sm:$0xff]
      %v283 = vld [vmem:[%s241 + $0x100] sm:$0xff]
      %v284 = vmul.f32 %v282, %v282
      %v285 = vmul.f32 %v283, %v283
      %v286 = vld [vmem:[%s241 + $0x8] sm:$0xff]
      %v287 = vld [vmem:[%s241 + $0x108] sm:$0xff]
      %v288 = vadd.f32 %v282, %v286
      %v289 = vadd.f32 %v283, %v287
      %v290 = vmul.f32 %v286, %v286
      %v291 = vmul.f32 %v287, %v287
      %v292 = vadd.f32 %v284, %v290
      %v293 = vadd.f32 %v285, %v291
      %v294 = vld [vmem:[%s241 + $0x10] sm:$0xff]
      %v295 = vld [vmem:[%s241 + $0x110] sm:$0xff]
      %v296 = vadd.f32 %v288, %v294
      %v297 = vadd.f32 %v289, %v295
      %v298 = vmul.f32 %v294, %v294
      %v299 = vmul.f32 %v295, %v295
      %v300 = vadd.f32 %v292, %v298
      %v301 = vadd.f32 %v293, %v299
      %v302 = vld [vmem:[%s241 + $0x18] sm:$0xff]
      %v303 = vld [vmem:[%s241 + $0x118] sm:$0xff]
      %v304 = vadd.f32 %v296, %v302
      %v305 = vadd.f32 %v297, %v303
      %v306 = vmul.f32 %v302, %v302
      %v307 = vmul.f32 %v303, %v303
      %v308 = vadd.f32 %v300, %v306
      %v309 = vadd.f32 %v301, %v307
      %v310 = vld [vmem:[%s241 + $0x20] sm:$0xff]
      %v311 = vld [vmem:[%s241 + $0x120] sm:$0xff]
      %v312 = vadd.f32 %v304, %v310
      %v313 = vadd.f32 %v305, %v311
      %v314 = vmul.f32 %v310, %v310
      %v315 = vmul.f32 %v311, %v311
      %v316 = vadd.f32 %v308, %v314
      %v317 = vadd.f32 %v309, %v315
      %v318 = vld [vmem:[%s241 + $0x28] sm:$0xff]
      %v319 = vld [vmem:[%s241 + $0x128] sm:$0xff]
      %v320 = vadd.f32 %v312, %v318
      %v321 = vadd.f32 %v313, %v319
      %v322 = vmul.f32 %v318, %v318
      %v323 = vmul.f32 %v319, %v319
      %v324 = vadd.f32 %v316, %v322
      %v325 = vadd.f32 %v317, %v323
      %v326 = vld [vmem:[%s241 + $0x30] sm:$0xff]
      %v327 = vld [vmem:[%s241 + $0x130] sm:$0xff]
      %v328 = vadd.f32 %v320, %v326
      %v329 = vadd.f32 %v321, %v327
      %v330 = vmul.f32 %v326, %v326
      %v331 = vmul.f32 %v327, %v327
      %v332 = vadd.f32 %v324, %v330
      %v333 = vadd.f32 %v325, %v331
      %v334 = vld [vmem:[%s241 + $0x38] sm:$0xff]
      %v335 = vld [vmem:[%s241 + $0x138] sm:$0xff]
      %v336 = vadd.f32 %v328, %v334
      %v337 = vadd.f32 %v329, %v335
      %v338 = vmul.f32 %v334, %v334
      %v339 = vmul.f32 %v335, %v335
      %v340 = vadd.f32 %v332, %v338
      %v341 = vadd.f32 %v333, %v339
      %v342 = vld [vmem:[%s241 + $0x40] sm:$0xff]
      %v343 = vld [vmem:[%s241 + $0x140] sm:$0xff]
      %v344 = vadd.f32 %v336, %v342
      %v345 = vadd.f32 %v337, %v343
      %v346 = vmul.f32 %v342, %v342
      %v347 = vmul.f32 %v343, %v343
      %v348 = vadd.f32 %v340, %v346
      %v349 = vadd.f32 %v341, %v347
      %v350 = vld [vmem:[%s241 + $0x48] sm:$0xff]
      %v351 = vld [vmem:[%s241 + $0x148] sm:$0xff]
      %v352 = vadd.f32 %v344, %v350
      %v353 = vadd.f32 %v345, %v351
      %v354 = vmul.f32 %v350, %v350
      %v355 = vmul.f32 %v351, %v351
      %v356 = vadd.f32 %v348, %v354
      %v357 = vadd.f32 %v349, %v355
      %v358 = vld [vmem:[%s241 + $0x50] sm:$0xff]
      %v359 = vld [vmem:[%s241 + $0x150] sm:$0xff]
      %v360 = vadd.f32 %v352, %v358
      %v361 = vadd.f32 %v353, %v359
      %v362 = vmul.f32 %v358, %v358
      %v363 = vmul.f32 %v359, %v359
      %v364 = vadd.f32 %v356, %v362
      %v365 = vadd.f32 %v357, %v363
      %v366 = vld [vmem:[%s241 + $0x58] sm:$0xff]
      %v367 = vld [vmem:[%s241 + $0x158] sm:$0xff]
      %v368 = vadd.f32 %v360, %v366
      %v369 = vadd.f32 %v361, %v367
      %v370 = vmul.f32 %v366, %v366
      %v371 = vmul.f32 %v367, %v367
      %v372 = vadd.f32 %v364, %v370
      %v373 = vadd.f32 %v365, %v371
      %v374 = vld [vmem:[%s241 + $0x60] sm:$0xff]
      %v375 = vld [vmem:[%s241 + $0x160] sm:$0xff]
      %v376 = vadd.f32 %v368, %v374
      %v377 = vadd.f32 %v369, %v375
      %v378 = vmul.f32 %v374, %v374
      %v379 = vmul.f32 %v375, %v375
      %v380 = vadd.f32 %v372, %v378
      %v381 = vadd.f32 %v373, %v379
      %v382 = vld [vmem:[%s241 + $0x68] sm:$0xff]
      %v383 = vld [vmem:[%s241 + $0x168] sm:$0xff]
      %v384 = vadd.f32 %v376, %v382
      %v385 = vadd.f32 %v377, %v383
      %v386 = vmul.f32 %v382, %v382
      %v387 = vmul.f32 %v383, %v383
      %v388 = vadd.f32 %v380, %v386
      %v389 = vadd.f32 %v381, %v387
      %v390 = vld [vmem:[%s241 + $0x70] sm:$0xff]
      %v391 = vld [vmem:[%s241 + $0x170] sm:$0xff]
      %v392 = vadd.f32 %v384, %v390
      %v393 = vadd.f32 %v385, %v391
      %v394 = vmul.f32 %v390, %v390
      %v395 = vmul.f32 %v391, %v391
      %v396 = vadd.f32 %v388, %v394
      %v397 = vadd.f32 %v389, %v395
      %v398 = vld [vmem:[%s241 + $0x78] sm:$0xff]
      %v399 = vld [vmem:[%s241 + $0x178] sm:$0xff]
      %v400 = vadd.f32 %v392, %v398
      %v401 = vadd.f32 %v393, %v399
      %v402 = vmul.f32 %v398, %v398
      %v403 = vmul.f32 %v399, %v399
      %v404 = vadd.f32 %v396, %v402
      %v405 = vadd.f32 %v397, %v403
      %v406 = vld [vmem:[%s241 + $0x80] sm:$0xff]
      %v407 = vld [vmem:[%s241 + $0x180] sm:$0xff]
      %v408 = vadd.f32 %v400, %v406
      %v409 = vadd.f32 %v401, %v407
      %v410 = vmul.f32 %v406, %v406
      %v411 = vmul.f32 %v407, %v407
      %v412 = vadd.f32 %v404, %v410
      %v413 = vadd.f32 %v405, %v411
      %v414 = vld [vmem:[%s241 + $0x88] sm:$0xff]
      %v415 = vld [vmem:[%s241 + $0x188] sm:$0xff]
      %v416 = vadd.f32 %v408, %v414
      %v417 = vadd.f32 %v409, %v415
      %v418 = vmul.f32 %v414, %v414
      %v419 = vmul.f32 %v415, %v415
      %v420 = vadd.f32 %v412, %v418
      %v421 = vadd.f32 %v413, %v419
      %v422 = vld [vmem:[%s241 + $0x90] sm:$0xff]
      %v423 = vld [vmem:[%s241 + $0x190] sm:$0xff]
      %v424 = vadd.f32 %v416, %v422
      %v425 = vadd.f32 %v417, %v423
      %v426 = vmul.f32 %v422, %v422
      %v427 = vmul.f32 %v423, %v423
      %v428 = vadd.f32 %v420, %v426
      %v429 = vadd.f32 %v421, %v427
      %v430 = vld [vmem:[%s241 + $0x98] sm:$0xff]
      %v431 = vld [vmem:[%s241 + $0x198] sm:$0xff]
      %v432 = vadd.f32 %v424, %v430
      %v433 = vadd.f32 %v425, %v431
      %v434 = vmul.f32 %v430, %v430
      %v435 = vmul.f32 %v431, %v431
      %v436 = vadd.f32 %v428, %v434
      %v437 = vadd.f32 %v429, %v435
      %v438 = vld [vmem:[%s241 + $0xa0] sm:$0xff]
      %v439 = vld [vmem:[%s241 + $0x1a0] sm:$0xff]
      %v440 = vadd.f32 %v432, %v438
      %v441 = vadd.f32 %v433, %v439
      %v442 = vmul.f32 %v438, %v438
      %v443 = vmul.f32 %v439, %v439
      %v444 = vadd.f32 %v436, %v442
      %v445 = vadd.f32 %v437, %v443
      %v446 = vld [vmem:[%s241 + $0xa8] sm:$0xff]
      %v447 = vld [vmem:[%s241 + $0x1a8] sm:$0xff]
      %v448 = vadd.f32 %v440, %v446
      %v449 = vadd.f32 %v441, %v447
      %v450 = vmul.f32 %v446, %v446
      %v451 = vmul.f32 %v447, %v447
      %v452 = vadd.f32 %v444, %v450
      %v453 = vadd.f32 %v445, %v451
      %v454 = vld [vmem:[%s241 + $0xb0] sm:$0xff]
      %v455 = vld [vmem:[%s241 + $0x1b0] sm:$0xff]
      %v456 = vadd.f32 %v448, %v454
      %v457 = vadd.f32 %v449, %v455
      %v458 = vmul.f32 %v454, %v454
      %v459 = vmul.f32 %v455, %v455
      %v460 = vadd.f32 %v452, %v458
      %v461 = vadd.f32 %v453, %v459
      %v462 = vld [vmem:[%s241 + $0xb8] sm:$0xff]
      %v463 = vld [vmem:[%s241 + $0x1b8] sm:$0xff]
      %v464 = vadd.f32 %v456, %v462
      %v465 = vadd.f32 %v457, %v463
      %v466 = vmul.f32 %v462, %v462
      %v467 = vmul.f32 %v463, %v463
      %v468 = vadd.f32 %v460, %v466
      %v469 = vadd.f32 %v461, %v467
      %v470 = vld [vmem:[%s241 + $0xc0] sm:$0xff]
      %v471 = vld [vmem:[%s241 + $0x1c0] sm:$0xff]
      %v472 = vadd.f32 %v464, %v470
      %v473 = vadd.f32 %v465, %v471
      %v474 = vmul.f32 %v470, %v470
      %v475 = vmul.f32 %v471, %v471
      %v476 = vadd.f32 %v468, %v474
      %v477 = vadd.f32 %v469, %v475
      %v478 = vld [vmem:[%s241 + $0xc8] sm:$0xff]
      %v479 = vld [vmem:[%s241 + $0x1c8] sm:$0xff]
      %v480 = vadd.f32 %v472, %v478
      %v481 = vadd.f32 %v473, %v479
      %v482 = vmul.f32 %v478, %v478
      %v483 = vmul.f32 %v479, %v479
      %v484 = vadd.f32 %v476, %v482
      %v485 = vadd.f32 %v477, %v483
      %v486 = vld [vmem:[%s241 + $0xd0] sm:$0xff]
      %v487 = vld [vmem:[%s241 + $0x1d0] sm:$0xff]
      %v488 = vadd.f32 %v480, %v486
      %v489 = vadd.f32 %v481, %v487
      %v490 = vmul.f32 %v486, %v486
      %v491 = vmul.f32 %v487, %v487
      %v492 = vadd.f32 %v484, %v490
      %v493 = vadd.f32 %v485, %v491
      %v494 = vld [vmem:[%s241 + $0xd8] sm:$0xff]
      %v495 = vld [vmem:[%s241 + $0x1d8] sm:$0xff]
      %v496 = vadd.f32 %v488, %v494
      %v497 = vadd.f32 %v489, %v495
      %v498 = vmul.f32 %v494, %v494
      %v499 = vmul.f32 %v495, %v495
      %v500 = vadd.f32 %v492, %v498
      %v501 = vadd.f32 %v493, %v499
      %v502 = vld [vmem:[%s241 + $0xe0] sm:$0xff]
      %v503 = vld [vmem:[%s241 + $0x1e0] sm:$0xff]
      %v504 = vadd.f32 %v496, %v502
      %v505 = vadd.f32 %v497, %v503
      %v506 = vmul.f32 %v502, %v502
      %v507 = vmul.f32 %v503, %v503
      %v508 = vadd.f32 %v500, %v506
      %v509 = vadd.f32 %v501, %v507
      %v510 = vld [vmem:[%s241 + $0xe8] sm:$0xff]
      %v511 = vld [vmem:[%s241 + $0x1e8] sm:$0xff]
      %v512 = vadd.f32 %v504, %v510
      %v513 = vadd.f32 %v505, %v511
      %v514 = vmul.f32 %v510, %v510
      %v515 = vmul.f32 %v511, %v511
      %v516 = vadd.f32 %v508, %v514
      %v517 = vadd.f32 %v509, %v515
      %v518 = vld [vmem:[%s241 + $0xf0] sm:$0xff]
      %v519 = vld [vmem:[%s241 + $0x1f0] sm:$0xff]
      %v520 = vadd.f32 %v512, %v518
      %v521 = vadd.f32 %v513, %v519
      %v522 = vmul.f32 %v518, %v518
      %v523 = vmul.f32 %v519, %v519
      %v524 = vadd.f32 %v516, %v522
      %v525 = vadd.f32 %v517, %v523
      %v526 = vld [vmem:[%s241 + $0xf8] sm:$0xff]
      %v527 = vld [vmem:[%s241 + $0x1f8] sm:$0xff]
      %v528 = vadd.f32 %v520, %v526
      %v529 = vadd.f32 %v521, %v527
      %v530 = vmul.f32 %v526, %v526
      %v531 = vmul.f32 %v527, %v527
      %v532 = vadd.f32 %v524, %v530
      %v533 = vadd.f32 %v525, %v531
      %v534 = vld [vmem:[%s256] sm:$0xff]
      %v535 = vld [vmem:[%s256 + $0x8] sm:$0xff]
      %v536 = vadd.f32 %v534, %v528
      %v537 = vadd.f32 %v535, %v529
      %538 = vst [vmem:[%s256] sm:$0xff] %v536
      %539 = vst [vmem:[%s256 + $0x8] sm:$0xff] %v537
      %v540 = vld [vmem:[%s270] sm:$0xff]
      %v541 = vld [vmem:[%s270 + $0x8] sm:$0xff]
      %v542 = vadd.f32 %v540, %v532
      %v543 = vadd.f32 %v541, %v533
      %544 = vst [vmem:[%s270] sm:$0xff] %v542
      %545 = vst [vmem:[%s270 + $0x8] sm:$0xff] %v543
      %s546 = smul.u32 %s20, 2
      %s547 = sadd.s32 %s546, %s21
      %s548 = smul.u32 2, %s22
      %p549 = scmp.lt.s32.totalorder %s547, 1
      %s550 = scalar_select %p549, %s547, 1
      %p551 = scmp.lt.s32.totalorder %s548, 1
      %s552 = scalar_select %p551, %s548, 1
      %s553 = smul.addr %s550, 2
      %s554 = sadd.s32 %s552, %s553
      %s555 = smul.addr %s554, 8
      %s556 = scalar_lea.vmem %s1, %s555
      %s557 = smul.u32 %s20, 2
      %s558 = sadd.s32 %s557, %s21
      %s559 = smul.u32 2, %s22
      %p560 = scmp.lt.s32.totalorder %s558, 1
      %s561 = scalar_select %p560, %s558, 1
      %p562 = scmp.lt.s32.totalorder %s559, 1
      %s563 = scalar_select %p562, %s559, 1
      %s564 = smul.addr %s561, 2
      %s565 = sadd.s32 %s563, %s564
      %s566 = smul.addr %s565, 8
      %s567 = scalar_lea.vmem %s2, %s566
      // Predicated region
      $region29: #{ibn_forward.2} parent=23 // pred_check
        %p568 = pneg %p98
      $region30: #{ibn_forward.2} parent=23 // pred_check_branch
        %570 = sbr.rel (%p568) target = $region32
      $region31: #{ibn_forward.2} parent=23 // pred_region
        %s571 = smul.u32 %s20, 2
        %s572 = sadd.s32 %s571, %s21
        %s573 = smul.u32 2, %s22
      $region32: #{ibn_forward.2} parent=23 // pred_fallthru
        _
      // Predicated region
      $region33: #{ibn_forward.2} parent=23 // pred_check
        %p574 = pneg %p130
      $region34: #{ibn_forward.2} parent=23 // pred_check_branch
        %576 = sbr.rel (%p574) target = $region36
      $region35: #{ibn_forward.2} parent=23 // pred_region
        %s577 = smul.u32 %s20, 2
        %s578 = sadd.s32 %s577, %s21
        %s579 = smul.u32 2, %s22
      $region36: #{ibn_forward.2} parent=23 // pred_fallthru
        _
    $region24: #{ibn_forward.2} parent=5 // pred_fallthru
      _
    %p580 = scmp.le.s32.totalorder 2, %s9
    // Predicated region
    $region37: #{ibn_forward.2} parent=5 // pred_check
      %p581 = pneg %p580
    $region38: #{ibn_forward.2} parent=5 // pred_check_branch
      %583 = sbr.rel (%p581) target = $region40
    $region39: #{ibn_forward.2} parent=5 // pred_region
      %s584 = ssub.s32 %s9, 2
      // Predicated region
      $region41: #{ibn_forward.2} parent=39 // pred_check
        %p585 = pneg %p104
      $region42: #{ibn_forward.2} parent=39 // pred_check_branch
        %587 = sbr.rel (%p585) target = $region44
      $region43: #{ibn_forward.2} parent=39 // pred_region
        %s588 = smul.u32 %s24, 2
        %s589 = sadd.s32 %s588, %s25
        %s590 = smul.u32 2, %s26
        %p591 = scmp.lt.s32.totalorder %s589, 1
        %s592 = scalar_select %p591, %s589, 1
        %p593 = scmp.lt.s32.totalorder %s590, 1
        %s594 = scalar_select %p593, %s590, 1
        %s595 = smul.addr %s592, 2
        %s596 = sadd.s32 %s594, %s595
        %s597 = smul.addr %s596, 8
        %s598 = scalar_lea.vmem %s1, %s597
      $region44: #{ibn_forward.2} parent=39 // pred_fallthru
        _
      // Predicated region
      $region45: #{ibn_forward.2} parent=39 // pred_check
        %p599 = pneg %p136
      $region46: #{ibn_forward.2} parent=39 // pred_check_branch
        %601 = sbr.rel (%p599) target = $region48
      $region47: #{ibn_forward.2} parent=39 // pred_region
        %s602 = smul.u32 %s24, 2
        %s603 = sadd.s32 %s602, %s25
        %s604 = smul.u32 2, %s26
        %p605 = scmp.lt.s32.totalorder %s603, 1
        %s606 = scalar_select %p605, %s603, 1
        %p607 = scmp.lt.s32.totalorder %s604, 1
        %s608 = scalar_select %p607, %s604, 1
        %s609 = smul.addr %s606, 2
        %s610 = sadd.s32 %s608, %s609
        %s611 = smul.addr %s610, 8
        %s612 = scalar_lea.vmem %s2, %s611
      $region48: #{ibn_forward.2} parent=39 // pred_fallthru
        _
    $region40: #{ibn_forward.2} parent=5 // pred_fallthru
      _
  $region6: #{ibn_forward.2} parent=0 // loop_footer
    %s13 = sadd.s32 1, %s9
  $region7: #{ibn_forward.2} parent=0 // loop_footer_branch
    %8 = sbr.rel target = $region3
  $region8: #{ibn_forward.2} parent=0 // loop_exit
    _

// kernel: ibn_forward.3
$region0: #{ibn_forward.3}
  #allocation0 [shape = 'u32[]', space=smem, size = 0x4, offset = 0x4, fixed_abs, tag = 'smem constant byte address 0x4 - core index']
  #allocation1 [shape = 'u32[144,128]{1,0:T(1,128)}', space=vmem, size = 0x12000, scoped, tag = 'internal scratch']
  %s0 = inlined_call_operand.vmem [shape: f32[2,32,4096], index: 0, kind: input, shape index: {}]
  %s1 = inlined_call_operand.vmem [shape: f32[1,32,1], index: 1, kind: input, shape index: {}]
  %s2 = inlined_call_operand.vmem [shape: f32[1,32,1], index: 2, kind: input, shape index: {}]
  %s3 = inlined_call_operand.vmem [shape: f32[2,32,4096], index: 3, kind: output, shape index: {}]
  %s4 = sld [smem:[#allocation0]]
  $region53: #{ibn_forward.3} parent=0
    _
  %s6 = ssub.s32 1, %s4
  %s7 = scalar_select 0, %s6, %s4
  loop: start=0, step=1, limit=6
  $region2: #{ibn_forward.3} parent=0 // loop_pre_header
    _
  $region3: #{ibn_forward.3} parent=0 // loop_header
    %s9 = sphi 0, %s13
    %p10 = scmp.ge.s32.totalorder %s9, 6
    %s16 = sphi 0, %s28
    %s17 = sphi 0, %s24
    %s18 = sphi 0, %s16
    %s19 = sphi 0, %s17
    %s20 = sphi 0, %s18
    %s21 = sphi 0, %s19
    %s33 = sphi 0, %s35
    %s36 = sphi 0, %s33
    %s37 = sphi 0, %s36
    %s53 = sphi 0, %s37
    %s59 = sphi 0, %s61
    %s62 = sphi 0, %s59
    %s63 = sphi 0, %s62
    %s79 = sphi 0, %s63
    %s85 = sphi 0, %s87
    %s88 = sphi 0, %s85
    %s89 = sphi 0, %s88
    %s105 = sphi 0, %s89
    %s113 = sphi 0, %s115
    %s116 = sphi 0, %s113
    %s117 = sphi 0, %s116
    %s133 = sphi 0, %s117
  $region4: #{ibn_forward.3} parent=0 // loop_header_branch
    %12 = sbr.rel (%p10) target = $region8
  $region5: #{ibn_forward.3} parent=0 // loop_body
    %s14 = ssub.s32 %s9, 1
    %s15 = ssub.s32 %s9, 2
    %s22 = sadd.s32 1, %s17
    %p23 = scmp.ge.s32.totalorder %s22, 2
    %s24 = scalar_select %p23, 0, %s22
    %s25 = sadd.s32 1, %s16
    %s26 = scalar_select %p23, %s25, %s16
    %p27 = scmp.ge.s32.totalorder %s26, 2
    %s28 = scalar_select %p27, 0, %s26
    %s29 = ssub.s32 %s16, %s28
    %s30 = ssub.s32 %s17, %s24
    %s31 = sor.u32 %s29, %s30
    %p32 = scmp.eq.s32.totalorder %s31, 0
    %s34 = sadd.s32 %s33, 1
    %s35 = scalar_select %p32, %s33, %s34
    %p38 = pneg %p32
    %p39 = scmp.eq.s32.totalorder %s9, 3
    %p40 = por %p38, %p39
    %p41 = scmp.ne.s32.totalorder %s33, %s36
    %p42 = scmp.eq.s32.totalorder %s9, 0
    %p43 = por %p41, %p42
    %p44 = scmp.ne.s32.totalorder %s33, %s36
    %p45 = scmp.eq.s32.totalorder %s14, 3
    %p46 = por %p44, %p45
    %p47 = scmp.ne.s32.totalorder %s36, %s37
    %p48 = scmp.eq.s32.totalorder %s14, 0
    %p49 = por %p47, %p48
    %p50 = scmp.ne.s32.totalorder %s36, %s37
    %p51 = scmp.eq.s32.totalorder %s15, 3
    %p52 = por %p50, %p51
    %p54 = scmp.ne.s32.totalorder %s37, %s53
    %p55 = scmp.eq.s32.totalorder %s15, 0
    %p56 = por %p54, %p55
    %s57 = ssub.s32 %s17, %s24
    %p58 = scmp.eq.s32.totalorder %s57, 0
    %s60 = sadd.s32 %s59, 1
    %s61 = scalar_select %p58, %s59, %s60
    %p64 = pneg %p58
    %p65 = scmp.eq.s32.totalorder %s9, 3
    %p66 = por %p64, %p65
    %p67 = scmp.ne.s32.totalorder %s59, %s62
    %p68 = scmp.eq.s32.totalorder %s9, 0
    %p69 = por %p67, %p68
    %p70 = scmp.ne.s32.totalorder %s59, %s62
    %p71 = scmp.eq.s32.totalorder %s14, 3
    %p72 = por %p70, %p71
    %p73 = scmp.ne.s32.totalorder %s62, %s63
    %p74 = scmp.eq.s32.totalorder %s14, 0
    %p75 = por %p73, %p74
    %p76 = scmp.ne.s32.totalorder %s62, %s63
    %p77 = scmp.eq.s32.totalorder %s15, 3
    %p78 = por %p76, %p77
    %p80 = scmp.ne.s32.totalorder %s63, %s79
    %p81 = scmp.eq.s32.totalorder %s15, 0
    %p82 = por %p80, %p81
    %s83 = ssub.s32 %s17, %s24
    %p84 = scmp.eq.s32.totalorder %s83, 0
    %s86 = sadd.s32 %s85, 1
    %s87 = scalar_select %p84, %s85, %s86
    %p90 = pneg %p84
    %p91 = scmp.eq.s32.totalorder %s9, 3
    %p92 = por %p90, %p91
    %p93 = scmp.ne.s32.totalorder %s85, %s88
    %p94 = scmp.eq.s32.totalorder %s9, 0
    %p95 = por %p93, %p94
    %p96 = scmp.ne.s32.totalorder %s85, %s88
    %p97 = scmp.eq.s32.totalorder %s14, 3
    %p98 = por %p96, %p97
    %p99 = scmp.ne.s32.totalorder %s88, %s89
    %p100 = scmp.eq.s32.totalorder %s14, 0
    %p101 = por %p99, %p100
    %p102 = scmp.ne.s32.totalorder %s88, %s89
    %p103 = scmp.eq.s32.totalorder %s15, 3
    %p104 = por %p102, %p103
    %p106 = scmp.ne.s32.totalorder %s89, %s105
    %p107 = scmp.eq.s32.totalorder %s15, 0
    %p108 = por %p106, %p107
    %s109 = ssub.s32 %s16, %s28
    %s110 = ssub.s32 %s17, %s24
    %s111 = sor.u32 %s109, %s110
    %p112 = scmp.eq.s32.totalorder %s111, 0
    %s114 = sadd.s32 %s113, 1
    %s115 = scalar_select %p112, %s113, %s114
    %p118 = pneg %p112
    %p119 = scmp.eq.s32.totalorder %s9, 3
    %p120 = por %p118, %p119
    %p121 = scmp.ne.s32.totalorder %s113, %s116
    %p122 = scmp.eq.s32.totalorder %s9, 0
    %p123 = por %p121, %p122
    %p124 = scmp.ne.s32.totalorder %s113, %s116
    %p125 = scmp.eq.s32.totalorder %s14, 3
    %p126 = por %p124, %p125
    %p127 = scmp.ne.s32.totalorder %s116, %s117
    %p128 = scmp.eq.s32.totalorder %s14, 0
    %p129 = por %p127, %p128
    %p130 = scmp.ne.s32.totalorder %s116, %s117
    %p131 = scmp.eq.s32.totalorder %s15, 3
    %p132 = por %p130, %p131
    %p134 = scmp.ne.s32.totalorder %s117, %s133
    %p135 = scmp.eq.s32.totalorder %s15, 0
    %p136 = por %p134, %p135
    %p137 = scmp.le.s32.totalorder 1, %s9
    %p138 = scmp.lt.s32.totalorder %s9, 5
    %p139 = pnand %p137, %p138
    %p140 = pneg %p139
    // Predicated region
    $region9: #{ibn_forward.3} parent=5 // pred_check
      _
    $region10: #{ibn_forward.3} parent=5 // pred_check_branch
      %142 = sbr.rel (%p139) target = $region12
    $region11: #{ibn_forward.3} parent=5 // pred_region
      %s143 = ssub.s32 %s9, 1
    $region12: #{ibn_forward.3} parent=5 // pred_fallthru
      _
    %p144 = scmp.lt.s32.totalorder %s9, 4
    // Predicated region
    $region13: #{ibn_forward.3} parent=5 // pred_check
      %p145 = pneg %p144
    $region14: #{ibn_forward.3} parent=5 // pred_check_branch
      %147 = sbr.rel (%p145) target = $region16
    $region15: #{ibn_forward.3} parent=5 // pred_region
      // Predicated region
      $region17: #{ibn_forward.3} parent=15 // pred_check
        %p148 = pneg %p43
      $region18: #{ibn_forward.3} parent=15 // pred_check_branch
        %150 = sbr.rel (%p148) target = $region20
      $region19: #{ibn_forward.3} parent=15 // pred_region
        %s151 = smul.u32 2, %s17
        %p152 = scmp.lt.s32.totalorder %s16, 1
        %s153 = scalar_select %p152, %s16, 1
        %p154 = scmp.lt.s32.totalorder %s151, 3
        %s155 = scalar_select %p154, %s151, 3
        %s156 = smul.addr %s155, 32
        %s157 = smul.addr %s153, 128
        %s158 = sadd.s32 %s156, %s157
        %s159 = smul.addr %s158, 8
        %s160 = scalar_lea.vmem %s0, %s159
        %s161 = smul.u32 2, %s17
      $region20: #{ibn_forward.3} parent=15 // pred_fallthru
        _
      // Predicated region
      $region21: #{ibn_forward.3} parent=15 // pred_check
        %p162 = pneg %p69
      $region22: #{ibn_forward.3} parent=15 // pred_check_branch
        %164 = sbr.rel (%p162) target = $region24
      $region23: #{ibn_forward.3} parent=15 // pred_region
        %s165 = smul.u32 2, %s17
        %p166 = scmp.lt.s32.totalorder %s165, 3
        %s167 = scalar_select %p166, %s165, 3
        %s168 = smul.addr %s167, 8
        %s169 = scalar_lea.vmem %s1, %s168
        %s170 = smul.u32 2, %s17
      $region24: #{ibn_forward.3} parent=15 // pred_fallthru
        _
      // Predicated region
      $region25: #{ibn_forward.3} parent=15 // pred_check
        %p171 = pneg %p95
      $region26: #{ibn_forward.3} parent=15 // pred_check_branch
        %173 = sbr.rel (%p171) target = $region28
      $region27: #{ibn_forward.3} parent=15 // pred_region
        %s174 = smul.u32 2, %s17
        %p175 = scmp.lt.s32.totalorder %s174, 3
        %s176 = scalar_select %p175, %s174, 3
        %s177 = smul.addr %s176, 8
        %s178 = scalar_lea.vmem %s2, %s177
        %s179 = smul.u32 2, %s17
      $region28: #{ibn_forward.3} parent=15 // pred_fallthru
        _
    $region16: #{ibn_forward.3} parent=5 // pred_fallthru
      _
    %p180 = scmp.le.s32.totalorder 1, %s9
    %p181 = scmp.lt.s32.totalorder %s9, 5
    %p182 = pnand %p180, %p181
    %p183 = pneg %p182
    // Predicated region
    $region29: #{ibn_forward.3} parent=5 // pred_check
      _
    $region30: #{ibn_forward.3} parent=5 // pred_check_branch
      %185 = sbr.rel (%p182) target = $region32
    $region31: #{ibn_forward.3} parent=5 // pred_region
      %s186 = ssub.s32 %s9, 1
      %s187 = smul.u32 2, %s19
      %p188 = scmp.lt.s32.totalorder %s18, 1
      %s189 = scalar_select %p188, %s18, 1
      %p190 = scmp.lt.s32.totalorder %s187, 3
      %s191 = scalar_select %p190, %s187, 3
      %s192 = smul.addr %s191, 32
      %s193 = smul.addr %s189, 128
      %s194 = sadd.s32 %s192, %s193
      %s195 = smul.addr %s194, 8
      %s196 = scalar_lea.vmem %s0, %s195
      %p197 = pneg %p49
      %p198 = pneg %p46
      %s199 = smul.u32 2, %s19
      %p200 = scmp.lt.s32.totalorder %s199, 3
      %s201 = scalar_select %p200, %s199, 3
      %s202 = smul.addr %s201, 8
      %s203 = scalar_lea.vmem %s1, %s202
      %p204 = pneg %p75
      %p205 = pneg %p72
      %s206 = smul.u32 2, %s19
      %p207 = scmp.lt.s32.totalorder %s206, 3
      %s208 = scalar_select %p207, %s206, 3
      %s209 = smul.addr %s208, 8
      %s210 = scalar_lea.vmem %s2, %s209
      %p211 = pneg %p101
      %p212 = pneg %p98
      %p213 = pneg %p129
      %p214 = pneg %p126
      %s215 = smul.u32 2, %s19
      %p216 = scmp.lt.s32.totalorder %s18, 1
      %s217 = scalar_select %p216, %s18, 1
      %p218 = scmp.lt.s32.totalorder %s215, 3
      %s219 = scalar_select %p218, %s215, 3
      %s220 = smul.addr %s219, 32
      %s221 = smul.addr %s217, 128
      %s222 = sadd.s32 %s220, %s221
      %s223 = smul.addr %s222, 8
      %s224 = scalar_lea.vmem %s3, %s223
      %s225 = smul.u32 2, %s19
      %p226 = scmp.lt.s32.totalorder %s18, 1
      %s227 = scalar_select %p226, %s18, 1
      %p228 = scmp.lt.s32.totalorder %s225, 3
      %s229 = scalar_select %p228, %s225, 3
      %s230 = smul.addr %s229, 32
      %s231 = smul.addr %s227, 128
      %s232 = sadd.s32 %s230, %s231
      %s233 = smul.addr %s232, 8
      %s234 = scalar_lea.vmem %s0, %s233
      %s235 = smul.u32 2, %s19
      %s236 = smul.u32 2, %s19
      %p237 = scmp.lt.s32.totalorder %s236, 3
      %s238 = scalar_select %p237, %s236, 3
      %s239 = smul.addr %s238, 8
      %s240 = scalar_lea.vmem %s1, %s239
      %s241 = smul.u32 2, %s19
      %s242 = smul.u32 2, %s19
      %p243 = scmp.lt.s32.totalorder %s242, 3
      %s244 = scalar_select %p243, %s242, 3
      %s245 = smul.addr %s244, 8
      %s246 = scalar_lea.vmem %s2, %s245
      %s247 = smul.u32 2, %s19
      %s248 = smul.u32 2, %s19
      %p249 = scmp.lt.s32.totalorder %s18, 1
      %s250 = scalar_select %p249, %s18, 1
      %p251 = scmp.lt.s32.totalorder %s248, 3
      %s252 = scalar_select %p251, %s248, 3
      %s253 = smul.addr %s252, 32
      %s254 = smul.addr %s250, 128
      %s255 = sadd.s32 %s253, %s254
      %s256 = smul.addr %s255, 8
      %s257 = scalar_lea.vmem %s3, %s256
      %s258 = smul.u32 2, %s19
      %v259 = vld [vmem:[%s234] sm:$0xff]
      %v260 = vld [vmem:[%s234 + $0x8] sm:$0xff]
      %v261 = vld [vmem:[%s234 + $0x10] sm:$0xff]
      %v262 = vld [vmem:[%s234 + $0x18] sm:$0xff]
      %v263 = vld [vmem:[%s234 + $0x20] sm:$0xff]
      %v264 = vld [vmem:[%s234 + $0x28] sm:$0xff]
      %v265 = vld [vmem:[%s234 + $0x30] sm:$0xff]
      %v266 = vld [vmem:[%s234 + $0x38] sm:$0xff]
      %v267 = vld [vmem:[%s234 + $0x40] sm:$0xff]
      %v268 = vld [vmem:[%s234 + $0x48] sm:$0xff]
      %v269 = vld [vmem:[%s234 + $0x50] sm:$0xff]
      %v270 = vld [vmem:[%s234 + $0x58] sm:$0xff]
      %v271 = vld [vmem:[%s234 + $0x60] sm:$0xff]
      %v272 = vld [vmem:[%s234 + $0x68] sm:$0xff]
      %v273 = vld [vmem:[%s234 + $0x70] sm:$0xff]
      %v274 = vld [vmem:[%s234 + $0x78] sm:$0xff]
      %v275 = vld [vmem:[%s234 + $0x80] sm:$0xff]
      %v276 = vld [vmem:[%s234 + $0x88] sm:$0xff]
      %v277 = vld [vmem:[%s234 + $0x90] sm:$0xff]
      %v278 = vld [vmem:[%s234 + $0x98] sm:$0xff]
      %v279 = vld [vmem:[%s234 + $0xa0] sm:$0xff]
      %v280 = vld [vmem:[%s234 + $0xa8] sm:$0xff]
      %v281 = vld [vmem:[%s234 + $0xb0] sm:$0xff]
      %v282 = vld [vmem:[%s234 + $0xb8] sm:$0xff]
      %v283 = vld [vmem:[%s234 + $0xc0] sm:$0xff]
      %v284 = vld [vmem:[%s234 + $0xc8] sm:$0xff]
      %v285 = vld [vmem:[%s234 + $0xd0] sm:$0xff]
      %v286 = vld [vmem:[%s234 + $0xd8] sm:$0xff]
      %v287 = vld [vmem:[%s234 + $0xe0] sm:$0xff]
      %v288 = vld [vmem:[%s234 + $0xe8] sm:$0xff]
      %v289 = vld [vmem:[%s234 + $0xf0] sm:$0xff]
      %v290 = vld [vmem:[%s234 + $0xf8] sm:$0xff]
      %v291 = vld [vmem:[%s234 + $0x100] sm:$0xff]
      %v292 = vld [vmem:[%s234 + $0x108] sm:$0xff]
      %v293 = vld [vmem:[%s234 + $0x110] sm:$0xff]
      %v294 = vld [vmem:[%s234 + $0x118] sm:$0xff]
      %v295 = vld [vmem:[%s234 + $0x120] sm:$0xff]
      %v296 = vld [vmem:[%s234 + $0x128] sm:$0xff]
      %v297 = vld [vmem:[%s234 + $0x130] sm:$0xff]
      %v298 = vld [vmem:[%s234 + $0x138] sm:$0xff]
      %v299 = vld [vmem:[%s234 + $0x140] sm:$0xff]
      %v300 = vld [vmem:[%s234 + $0x148] sm:$0xff]
      %v301 = vld [vmem:[%s234 + $0x150] sm:$0xff]
      %v302 = vld [vmem:[%s234 + $0x158] sm:$0xff]
      %v303 = vld [vmem:[%s234 + $0x160] sm:$0xff]
      %v304 = vld [vmem:[%s234 + $0x168] sm:$0xff]
      %v305 = vld [vmem:[%s234 + $0x170] sm:$0xff]
      %v306 = vld [vmem:[%s234 + $0x178] sm:$0xff]
      %v307 = vld [vmem:[%s234 + $0x180] sm:$0xff]
      %v308 = vld [vmem:[%s234 + $0x188] sm:$0xff]
      %v309 = vld [vmem:[%s234 + $0x190] sm:$0xff]
      %v310 = vld [vmem:[%s234 + $0x198] sm:$0xff]
      %v311 = vld [vmem:[%s234 + $0x1a0] sm:$0xff]
      %v312 = vld [vmem:[%s234 + $0x1a8] sm:$0xff]
      %v313 = vld [vmem:[%s234 + $0x1b0] sm:$0xff]
      %v314 = vld [vmem:[%s234 + $0x1b8] sm:$0xff]
      %v315 = vld [vmem:[%s234 + $0x1c0] sm:$0xff]
      %v316 = vld [vmem:[%s234 + $0x1c8] sm:$0xff]
      %v317 = vld [vmem:[%s234 + $0x1d0] sm:$0xff]
      %v318 = vld [vmem:[%s234 + $0x1d8] sm:$0xff]
      %v319 = vld [vmem:[%s234 + $0x1e0] sm:$0xff]
      %v320 = vld [vmem:[%s234 + $0x1e8] sm:$0xff]
      %v321 = vld [vmem:[%s234 + $0x1f0] sm:$0xff]
      %v322 = vld [vmem:[%s234 + $0x1f8] sm:$0xff]
      %p323 = scmp.lt.s32.totalorder %s19, 1
      // Predicated region
      $region33: #{ibn_forward.3} parent=31 // pred_check
        %p324 = pneg %p323
      $region34: #{ibn_forward.3} parent=31 // pred_check_branch
        %326 = sbr.rel (%p324) target = $region36
      $region35: #{ibn_forward.3} parent=31 // pred_region
        %v327 = vadd.f32 %v259, %v260
        %v328 = vadd.f32 %v327, %v261
        %v329 = vadd.f32 %v328, %v262
        %v330 = vadd.f32 %v329, %v263
        %v331 = vadd.f32 %v330, %v264
        %v332 = vadd.f32 %v331, %v265
        %v333 = vadd.f32 %v332, %v266
        %v334 = vadd.f32 %v333, %v267
        %v335 = vadd.f32 %v334, %v268
        %v336 = vadd.f32 %v335, %v269
        %v337 = vadd.f32 %v336, %v270
        %v338 = vadd.f32 %v337, %v271
        %v339 = vadd.f32 %v338, %v272
        %v340 = vadd.f32 %v339, %v273
        %v341 = vadd.f32 %v340, %v274
        %v342 = vadd.f32 %v341, %v275
        %v343 = vadd.f32 %v342, %v276
        %v344 = vadd.f32 %v343, %v277
        %v345 = vadd.f32 %v344, %v278
        %v346 = vadd.f32 %v345, %v279
        %v347 = vadd.f32 %v346, %v280
        %v348 = vadd.f32 %v347, %v281
        %v349 = vadd.f32 %v348, %v282
        %v350 = vadd.f32 %v349, %v283
        %v351 = vadd.f32 %v350, %v284
        %v352 = vadd.f32 %v351, %v285
        %v353 = vadd.f32 %v352, %v286
        %v354 = vadd.f32 %v353, %v287
        %v355 = vadd.f32 %v354, %v288
        %v356 = vadd.f32 %v355, %v289
        %v357 = vadd.f32 %v356, %v290
        %358 = vadd.xlane.f32.xlu0 %v357
        %v359 = vpop.xlane.xlu0 %358
        %v360 = vadd.f32 %v291, %v292
        %v361 = vadd.f32 %v360, %v293
        %v362 = vadd.f32 %v361, %v294
        %v363 = vadd.f32 %v362, %v295
        %v364 = vadd.f32 %v363, %v296
        %v365 = vadd.f32 %v364, %v297
        %v366 = vadd.f32 %v365, %v298
        %v367 = vadd.f32 %v366, %v299
        %v368 = vadd.f32 %v367, %v300
        %v369 = vadd.f32 %v368, %v301
        %v370 = vadd.f32 %v369, %v302
        %v371 = vadd.f32 %v370, %v303
        %v372 = vadd.f32 %v371, %v304
        %v373 = vadd.f32 %v372, %v305
        %v374 = vadd.f32 %v373, %v306
        %v375 = vadd.f32 %v374, %v307
        %v376 = vadd.f32 %v375, %v308
        %v377 = vadd.f32 %v376, %v309
        %v378 = vadd.f32 %v377, %v310
        %v379 = vadd.f32 %v378, %v311
        %v380 = vadd.f32 %v379, %v312
        %v381 = vadd.f32 %v380, %v313
        %v382 = vadd.f32 %v381, %v314
        %v383 = vadd.f32 %v382, %v315
        %v384 = vadd.f32 %v383, %v316
        %v385 = vadd.f32 %v384, %v317
        %v386 = vadd.f32 %v385, %v318
        %v387 = vadd.f32 %v386, %v319
        %v388 = vadd.f32 %v387, %v320
        %v389 = vadd.f32 %v388, %v321
        %v390 = vadd.f32 %v389, %v322
        %391 = vadd.xlane.f32.xlu0 %v390
        %v392 = vpop.xlane.xlu0 %391
        %v393 = vmul.f32 %v259, %v259
        %v394 = vmul.f32 %v260, %v260
        %v395 = vmul.f32 %v261, %v261
        %v396 = vmul.f32 %v262, %v262
        %v397 = vmul.f32 %v263, %v263
        %v398 = vmul.f32 %v264, %v264
        %v399 = vmul.f32 %v265, %v265
        %v400 = vmul.f32 %v266, %v266
        %v401 = vmul.f32 %v267, %v267
        %v402 = vmul.f32 %v268, %v268
        %v403 = vmul.f32 %v269, %v269
        %v404 = vmul.f32 %v270, %v270
        %v405 = vmul.f32 %v271, %v271
        %v406 = vmul.f32 %v272, %v272
        %v407 = vmul.f32 %v273, %v273
        %v408 = vmul.f32 %v274, %v274
        %v409 = vmul.f32 %v275, %v275
        %v410 = vmul.f32 %v276, %v276
        %v411 = vmul.f32 %v277, %v277
        %v412 = vmul.f32 %v278, %v278
        %v413 = vmul.f32 %v279, %v279
        %v414 = vmul.f32 %v280, %v280
        %v415 = vmul.f32 %v281, %v281
        %v416 = vmul.f32 %v282, %v282
        %v417 = vmul.f32 %v283, %v283
        %v418 = vmul.f32 %v284, %v284
        %v419 = vmul.f32 %v285, %v285
        %v420 = vmul.f32 %v286, %v286
        %v421 = vmul.f32 %v287, %v287
        %v422 = vmul.f32 %v288, %v288
        %v423 = vmul.f32 %v289, %v289
        %v424 = vmul.f32 %v290, %v290
        %v425 = vmul.f32 %v291, %v291
        %v426 = vmul.f32 %v292, %v292
        %v427 = vmul.f32 %v293, %v293
        %v428 = vmul.f32 %v294, %v294
        %v429 = vmul.f32 %v295, %v295
        %v430 = vmul.f32 %v296, %v296
        %v431 = vmul.f32 %v297, %v297
        %v432 = vmul.f32 %v298, %v298
        %v433 = vmul.f32 %v299, %v299
        %v434 = vmul.f32 %v300, %v300
        %v435 = vmul.f32 %v301, %v301
        %v436 = vmul.f32 %v302, %v302
        %v437 = vmul.f32 %v303, %v303
        %v438 = vmul.f32 %v304, %v304
        %v439 = vmul.f32 %v305, %v305
        %v440 = vmul.f32 %v306, %v306
        %v441 = vmul.f32 %v307, %v307
        %v442 = vmul.f32 %v308, %v308
        %v443 = vmul.f32 %v309, %v309
        %v444 = vmul.f32 %v310, %v310
        %v445 = vmul.f32 %v311, %v311
        %v446 = vmul.f32 %v312, %v312
        %v447 = vmul.f32 %v313, %v313
        %v448 = vmul.f32 %v314, %v314
        %v449 = vmul.f32 %v315, %v315
        %v450 = vmul.f32 %v316, %v316
        %v451 = vmul.f32 %v317, %v317
        %v452 = vmul.f32 %v318, %v318
        %v453 = vmul.f32 %v319, %v319
        %v454 = vmul.f32 %v320, %v320
        %v455 = vmul.f32 %v321, %v321
        %v456 = vmul.f32 %v322, %v322
        %v457 = vadd.f32 %v393, %v394
        %v458 = vadd.f32 %v457, %v395
        %v459 = vadd.f32 %v458, %v396
        %v460 = vadd.f32 %v459, %v397
        %v461 = vadd.f32 %v460, %v398
        %v462 = vadd.f32 %v461, %v399
        %v463 = vadd.f32 %v462, %v400
        %v464 = vadd.f32 %v463, %v401
        %v465 = vadd.f32 %v464, %v402
        %v466 = vadd.f32 %v465, %v403
        %v467 = vadd.f32 %v466, %v404
        %v468 = vadd.f32 %v467, %v405
        %v469 = vadd.f32 %v468, %v406
        %v470 = vadd.f32 %v469, %v407
        %v471 = vadd.f32 %v470, %v408
        %v472 = vadd.f32 %v471, %v409
        %v473 = vadd.f32 %v472, %v410
        %v474 = vadd.f32 %v473, %v411
        %v475 = vadd.f32 %v474, %v412
        %v476 = vadd.f32 %v475, %v413
        %v477 = vadd.f32 %v476, %v414
        %v478 = vadd.f32 %v477, %v415
        %v479 = vadd.f32 %v478, %v416
        %v480 = vadd.f32 %v479, %v417
        %v481 = vadd.f32 %v480, %v418
        %v482 = vadd.f32 %v481, %v419
        %v483 = vadd.f32 %v482, %v420
        %v484 = vadd.f32 %v483, %v421
        %v485 = vadd.f32 %v484, %v422
        %v486 = vadd.f32 %v485, %v423
        %v487 = vadd.f32 %v486, %v424
        %488 = vadd.xlane.f32.xlu0 %v487
        %v489 = vpop.xlane.xlu0 %488
        %v490 = vadd.f32 %v425, %v426
        %v491 = vadd.f32 %v490, %v427
        %v492 = vadd.f32 %v491, %v428
        %v493 = vadd.f32 %v492, %v429
        %v494 = vadd.f32 %v493, %v430
        %v495 = vadd.f32 %v494, %v431
        %v496 = vadd.f32 %v495, %v432
        %v497 = vadd.f32 %v496, %v433
        %v498 = vadd.f32 %v497, %v434
        %v499 = vadd.f32 %v498, %v435
        %v500 = vadd.f32 %v499, %v436
        %v501 = vadd.f32 %v500, %v437
        %v502 = vadd.f32 %v501, %v438
        %v503 = vadd.f32 %v502, %v439
        %v504 = vadd.f32 %v503, %v440
        %v505 = vadd.f32 %v504, %v441
        %v506 = vadd.f32 %v505, %v442
        %v507 = vadd.f32 %v506, %v443
        %v508 = vadd.f32 %v507, %v444
        %v509 = vadd.f32 %v508, %v445
        %v510 = vadd.f32 %v509, %v446
        %v511 = vadd.f32 %v510, %v447
        %v512 = vadd.f32 %v511, %v448
        %v513 = vadd.f32 %v512, %v449
        %v514 = vadd.f32 %v513, %v450
        %v515 = vadd.f32 %v514, %v451
        %v516 = vadd.f32 %v515, %v452
        %v517 = vadd.f32 %v516, %v453
        %v518 = vadd.f32 %v517, %v454
        %v519 = vadd.f32 %v518, %v455
        %v520 = vadd.f32 %v519, %v456
        %521 = vadd.xlane.f32.xlu0 %v520
        %v522 = vpop.xlane.xlu0 %521
        %v523 = vmul.f32 %v359, 0.00024414063
        %v524 = vmul.f32 %v392, 0.00024414063
        %v525 = vmul.f32 %v489, 0.00024414063
        %v526 = vmul.f32 %v522, 0.00024414063
        %v527 = vmul.f32 %v523, %v523
        %v528 = vmul.f32 %v524, %v524
        %v529 = vsub.f32 %v525, %v527
        %v530 = vsub.f32 %v526, %v528
        %v531 = vmax.f32 %v529, 0.0
        %v532 = vmax.f32 %v530, 0.0
        %v533 = vadd.f32 %v531, 1e-05
        %v534 = vadd.f32 %v532, 1e-05
        %v535 = vrsqrt.pop %v533
        %v536 = vrsqrt.pop %v534
        %v537 = vld [vmem:[%s240] sm:$0xff]
        %v538 = vld [vmem:[%s240 + $0x8] sm:$0xff]
        %v539 = vmul.f32 %v535, %v537
        %v540 = vmul.f32 %v536, %v538
        %v541 = vld [vmem:[%s246] sm:$0xff]
        %v542 = vld [vmem:[%s246 + $0x8] sm:$0xff]
        %v543 = vmul.f32 %v523, %v539
        %v544 = vmul.f32 %v524, %v540
        %v545 = vsub.f32 %v541, %v543
        %v546 = vsub.f32 %v542, %v544
        %548 = vset.pattern.permute.xlu0 0
        %549 = vperm.xlu0 %548, %v539
        %v550 = vpop.permute.xlu0 %549
        %553 = vset.pattern.permute.xlu0 0
        %554 = vperm.xlu0 %553, %v540
        %v555 = vpop.permute.xlu0 %554
        %v557 = vmul.f32 %v259, %v550
        %v558 = vmul.f32 %v260, %v550
        %v559 = vmul.f32 %v261, %v550
        %v560 = vmul.f32 %v262, %v550
        %v561 = vmul.f32 %v263, %v550
        %v562 = vmul.f32 %v264, %v550
        %v563 = vmul.f32 %v265, %v550
        %v564 = vmul.f32 %v266, %v550
        %v565 = vmul.f32 %v267, %v550
        %v566 = vmul.f32 %v268, %v550
        %v567 = vmul.f32 %v269, %v550
        %v568 = vmul.f32 %v270, %v550
        %v569 = vmul.f32 %v271, %v550
        %v570 = vmul.f32 %v272, %v550
        %v571 = vmul.f32 %v273, %v550
        %v572 = vmul.f32 %v274, %v550
        %v573 = vmul.f32 %v275, %v550
        %v574 = vmul.f32 %v276, %v550
        %v575 = vmul.f32 %v277, %v550
        %v576 = vmul.f32 %v278, %v550
        %v577 = vmul.f32 %v279, %v550
        %v578 = vmul.f32 %v280, %v550
        %v579 = vmul.f32 %v281, %v550
        %v580 = vmul.f32 %v282, %v550
        %v581 = vmul.f32 %v283, %v550
        %v582 = vmul.f32 %v284, %v550
        %v583 = vmul.f32 %v285, %v550
        %v584 = vmul.f32 %v286, %v550
        %v585 = vmul.f32 %v287, %v550
        %v586 = vmul.f32 %v288, %v550
        %v587 = vmul.f32 %v289, %v550
        %v588 = vmul.f32 %v290, %v550
        %v589 = vmul.f32 %v291, %v555
        %v590 = vmul.f32 %v292, %v555
        %v591 = vmul.f32 %v293, %v555
        %v592 = vmul.f32 %v294, %v555
        %v593 = vmul.f32 %v295, %v555
        %v594 = vmul.f32 %v296, %v555
        %v595 = vmul.f32 %v297, %v555
        %v596 = vmul.f32 %v298, %v555
        %v597 = vmul.f32 %v299, %v555
        %v598 = vmul.f32 %v300, %v555
        %v599 = vmul.f32 %v301, %v555
        %v600 = vmul.f32 %v302, %v555
        %v601 = vmul.f32 %v303, %v555
        %v602 = vmul.f32 %v304, %v555
        %v603 = vmul.f32 %v305, %v555
        %v604 = vmul.f32 %v306, %v555
        %v605 = vmul.f32 %v307, %v555
        %v606 = vmul.f32 %v308, %v555
        %v607 = vmul.f32 %v309, %v555
        %v608 = vmul.f32 %v310, %v555
        %v609 = vmul.f32 %v311, %v555
        %v610 = vmul.f32 %v312, %v555
        %v611 = vmul.f32 %v313, %v555
        %v612 = vmul.f32 %v314, %v555
        %v613 = vmul.f32 %v315, %v555
        %v614 = vmul.f32 %v316, %v555
        %v615 = vmul.f32 %v317, %v555
        %v616 = vmul.f32 %v318, %v555
        %v617 = vmul.f32 %v319, %v555
        %v618 = vmul.f32 %v320, %v555
        %v619 = vmul.f32 %v321, %v555
        %v620 = vmul.f32 %v322, %v555
        %622 = vset.pattern.permute.xlu0 0
        %623 = vperm.xlu0 %622, %v545
        %v624 = vpop.permute.xlu0 %623
        %627 = vset.pattern.permute.xlu0 0
        %628 = vperm.xlu0 %627, %v546
        %v629 = vpop.permute.xlu0 %628
        %v631 = vadd.f32 %v557, %v624
        %v632 = vadd.f32 %v558, %v624
        %v633 = vadd.f32 %v559, %v624
        %v634 = vadd.f32 %v560, %v624
        %v635 = vadd.f32 %v561, %v624
        %v636 = vadd.f32 %v562, %v624
        %v637 = vadd.f32 %v563, %v624
        %v638 = vadd.f32 %v564, %v624
        %v639 = vadd.f32 %v565, %v624
        %v640 = vadd.f32 %v566, %v624
        %v641 = vadd.f32 %v567, %v624
        %v642 = vadd.f32 %v568, %v624
        %v643 = vadd.f32 %v569, %v624
        %v644 = vadd.f32 %v570, %v624
        %v645 = vadd.f32 %v571, %v624
        %v646 = vadd.f32 %v572, %v624
        %v647 = vadd.f32 %v573, %v624
        %v648 = vadd.f32 %v574, %v624
        %v649 = vadd.f32 %v575, %v624
        %v650 = vadd.f32 %v576, %v624
        %v651 = vadd.f32 %v577, %v624
        %v652 = vadd.f32 %v578, %v624
        %v653 = vadd.f32 %v579, %v624
        %v654 = vadd.f32 %v580, %v624
        %v655 = vadd.f32 %v581, %v624
        %v656 = vadd.f32 %v582, %v624
        %v657 = vadd.f32 %v583, %v624
        %v658 = vadd.f32 %v584, %v624
        %v659 = vadd.f32 %v585, %v624
        %v660 = vadd.f32 %v586, %v624
        %v661 = vadd.f32 %v587, %v624
        %v662 = vadd.f32 %v588, %v624
        %v663 = vadd.f32 %v589, %v629
        %v664 = vadd.f32 %v590, %v629
        %v665 = vadd.f32 %v591, %v629
        %v666 = vadd.f32 %v592, %v629
        %v667 = vadd.f32 %v593, %v629
        %v668 = vadd.f32 %v594, %v629
        %v669 = vadd.f32 %v595, %v629
        %v670 = vadd.f32 %v596, %v629
        %v671 = vadd.f32 %v597, %v629
        %v672 = vadd.f32 %v598, %v629
        %v673 = vadd.f32 %v599, %v629
        %v674 = vadd.f32 %v600, %v629
        %v675 = vadd.f32 %v601, %v629
        %v676 = vadd.f32 %v602, %v629
        %v677 = vadd.f32 %v603, %v629
        %v678 = vadd.f32 %v604, %v629
        %v679 = vadd.f32 %v605, %v629
        %v680 = vadd.f32 %v606, %v629
        %v681 = vadd.f32 %v607, %v629
        %v682 = vadd.f32 %v608, %v629
        %v683 = vadd.f32 %v609, %v629
        %v684 = vadd.f32 %v610, %v629
        %v685 = vadd.f32 %v611, %v629
        %v686 = vadd.f32 %v612, %v629
        %v687 = vadd.f32 %v613, %v629
        %v688 = vadd.f32 %v614, %v629
        %v689 = vadd.f32 %v615, %v629
        %v690 = vadd.f32 %v616, %v629
        %v691 = vadd.f32 %v617, %v629
        %v692 = vadd.f32 %v618, %v629
        %v693 = vadd.f32 %v619, %v629
        %v694 = vadd.f32 %v620, %v629
        %695 = vst [vmem:[%s257] sm:$0xff] %v631
        %696 = vst [vmem:[%s257 + $0x8] sm:$0xff] %v632
        %697 = vst [vmem:[%s257 + $0x10] sm:$0xff] %v633
        %698 = vst [vmem:[%s257 + $0x18] sm:$0xff] %v634
        %699 = vst [vmem:[%s257 + $0x20] sm:$0xff] %v635
        %700 = vst [vmem:[%s257 + $0x28] sm:$0xff] %v636
        %701 = vst [vmem:[%s257 + $0x30] sm:$0xff] %v637
        %702 = vst [vmem:[%s257 + $0x38] sm:$0xff] %v638
        %703 = vst [vmem:[%s257 + $0x40] sm:$0xff] %v639
        %704 = vst [vmem:[%s257 + $0x48] sm:$0xff] %v640
        %705 = vst [vmem:[%s257 + $0x50] sm:$0xff] %v641
        %706 = vst [vmem:[%s257 + $0x58] sm:$0xff] %v642
        %707 = vst [vmem:[%s257 + $0x60] sm:$0xff] %v643
        %708 = vst [vmem:[%s257 + $0x68] sm:$0xff] %v644
        %709 = vst [vmem:[%s257 + $0x70] sm:$0xff] %v645
        %710 = vst [vmem:[%s257 + $0x78] sm:$0xff] %v646
        %711 = vst [vmem:[%s257 + $0x80] sm:$0xff] %v647
        %712 = vst [vmem:[%s257 + $0x88] sm:$0xff] %v648
        %713 = vst [vmem:[%s257 + $0x90] sm:$0xff] %v649
        %714 = vst [vmem:[%s257 + $0x98] sm:$0xff] %v650
        %715 = vst [vmem:[%s257 + $0xa0] sm:$0xff] %v651
        %716 = vst [vmem:[%s257 + $0xa8] sm:$0xff] %v652
        %717 = vst [vmem:[%s257 + $0xb0] sm:$0xff] %v653
        %718 = vst [vmem:[%s257 + $0xb8] sm:$0xff] %v654
        %719 = vst [vmem:[%s257 + $0xc0] sm:$0xff] %v655
        %720 = vst [vmem:[%s257 + $0xc8] sm:$0xff] %v656
        %721 = vst [vmem:[%s257 + $0xd0] sm:$0xff] %v657
        %722 = vst [vmem:[%s257 + $0xd8] sm:$0xff] %v658
        %723 = vst [vmem:[%s257 + $0xe0] sm:$0xff] %v659
        %724 = vst [vmem:[%s257 + $0xe8] sm:$0xff] %v660
        %725 = vst [vmem:[%s257 + $0xf0] sm:$0xff] %v661
        %726 = vst [vmem:[%s257 + $0xf8] sm:$0xff] %v662
        %727 = vst [vmem:[%s257 + $0x100] sm:$0xff] %v663
        %728 = vst [vmem:[%s257 + $0x108] sm:$0xff] %v664
        %729 = vst [vmem:[%s257 + $0x110] sm:$0xff] %v665
        %730 = vst [vmem:[%s257 + $0x118] sm:$0xff] %v666
        %731 = vst [vmem:[%s257 + $0x120] sm:$0xff] %v667
        %732 = vst [vmem:[%s257 + $0x128] sm:$0xff] %v668
        %733 = vst [vmem:[%s257 + $0x130] sm:$0xff] %v669
        %734 = vst [vmem:[%s257 + $0x138] sm:$0xff] %v670
        %735 = vst [vmem:[%s257 + $0x140] sm:$0xff] %v671
        %736 = vst [vmem:[%s257 + $0x148] sm:$0xff] %v672
        %737 = vst [vmem:[%s257 + $0x150] sm:$0xff] %v673
        %738 = vst [vmem:[%s257 + $0x158] sm:$0xff] %v674
        %739 = vst [vmem:[%s257 + $0x160] sm:$0xff] %v675
        %740 = vst [vmem:[%s257 + $0x168] sm:$0xff] %v676
        %741 = vst [vmem:[%s257 + $0x170] sm:$0xff] %v677
        %742 = vst [vmem:[%s257 + $0x178] sm:$0xff] %v678
        %743 = vst [vmem:[%s257 + $0x180] sm:$0xff] %v679
        %744 = vst [vmem:[%s257 + $0x188] sm:$0xff] %v680
        %745 = vst [vmem:[%s257 + $0x190] sm:$0xff] %v681
        %746 = vst [vmem:[%s257 + $0x198] sm:$0xff] %v682
        %747 = vst [vmem:[%s257 + $0x1a0] sm:$0xff] %v683
        %748 = vst [vmem:[%s257 + $0x1a8] sm:$0xff] %v684
        %749 = vst [vmem:[%s257 + $0x1b0] sm:$0xff] %v685
        %750 = vst [vmem:[%s257 + $0x1b8] sm:$0xff] %v686
        %751 = vst [vmem:[%s257 + $0x1c0] sm:$0xff] %v687
        %752 = vst [vmem:[%s257 + $0x1c8] sm:$0xff] %v688
        %753 = vst [vmem:[%s257 + $0x1d0] sm:$0xff] %v689
        %754 = vst [vmem:[%s257 + $0x1d8] sm:$0xff] %v690
        %755 = vst [vmem:[%s257 + $0x1e0] sm:$0xff] %v691
        %756 = vst [vmem:[%s257 + $0x1e8] sm:$0xff] %v692
        %757 = vst [vmem:[%s257 + $0x1f0] sm:$0xff] %v693
        %758 = vst [vmem:[%s257 + $0x1f8] sm:$0xff] %v694
      $region36: #{ibn_forward.3} parent=31 // pred_fallthru
        _
      %p759 = scmp.ge.s32.totalorder %s19, 1
      // Predicated region
      $region37: #{ibn_forward.3} parent=31 // pred_check
        %p760 = pneg %p759
      $region38: #{ibn_forward.3} parent=31 // pred_check_branch
        %762 = sbr.rel (%p760) target = $region40
      $region39: #{ibn_forward.3} parent=31 // pred_region
        %v763 = vld [vmem:[%s240] sm:$0xff]
        %v764 = vld [vmem:[%s240 + $0x8] sm:$0xff]
        %766 = vset.pattern.permute.xlu0 0
        %767 = vperm.xlu0 %766, %v763
        %v768 = vpop.permute.xlu0 %767
        %771 = vset.pattern.permute.xlu0 0
        %772 = vperm.xlu0 %771, %v764
        %v773 = vpop.permute.xlu0 %772
        %v775 = vmul.f32 %v259, %v768
        %v776 = vmul.f32 %v260, %v768
        %v777 = vmul.f32 %v261, %v768
        %v778 = vmul.f32 %v262, %v768
        %v779 = vmul.f32 %v263, %v768
        %v780 = vmul.f32 %v264, %v768
        %v781 = vmul.f32 %v265, %v768
        %v782 = vmul.f32 %v266, %v768
        %v783 = vmul.f32 %v267, %v768
        %v784 = vmul.f32 %v268, %v768
        %v785 = vmul.f32 %v269, %v768
        %v786 = vmul.f32 %v270, %v768
        %v787 = vmul.f32 %v271, %v768
        %v788 = vmul.f32 %v272, %v768
        %v789 = vmul.f32 %v273, %v768
        %v790 = vmul.f32 %v274, %v768
        %v791 = vmul.f32 %v275, %v768
        %v792 = vmul.f32 %v276, %v768
        %v793 = vmul.f32 %v277, %v768
        %v794 = vmul.f32 %v278, %v768
        %v795 = vmul.f32 %v279, %v768
        %v796 = vmul.f32 %v280, %v768
        %v797 = vmul.f32 %v281, %v768
        %v798 = vmul.f32 %v282, %v768
        %v799 = vmul.f32 %v283, %v768
        %v800 = vmul.f32 %v284, %v768
        %v801 = vmul.f32 %v285, %v768
        %v802 = vmul.f32 %v286, %v768
        %v803 = vmul.f32 %v287, %v768
        %v804 = vmul.f32 %v288, %v768
        %v805 = vmul.f32 %v289, %v768
        %v806 = vmul.f32 %v290, %v768
        %v807 = vmul.f32 %v291, %v773
        %v808 = vmul.f32 %v292, %v773
        %v809 = vmul.f32 %v293, %v773
        %v810 = vmul.f32 %v294, %v773
        %v811 = vmul.f32 %v295, %v773
        %v812 = vmul.f32 %v296, %v773
        %v813 = vmul.f32 %v297, %v773
        %v814 = vmul.f32 %v298, %v773
        %v815 = vmul.f32 %v299, %v773
        %v816 = vmul.f32 %v300, %v773
        %v817 = vmul.f32 %v301, %v773
        %v818 = vmul.f32 %v302, %v773
        %v819 = vmul.f32 %v303, %v773
        %v820 = vmul.f32 %v304, %v773
        %v821 = vmul.f32 %v305, %v773
        %v822 = vmul.f32 %v306, %v773
        %v823 = vmul.f32 %v307, %v773
        %v824 = vmul.f32 %v308, %v773
        %v825 = vmul.f32 %v309, %v773
        %v826 = vmul.f32 %v310, %v773
        %v827 = vmul.f32 %v311, %v773
        %v828 = vmul.f32 %v312, %v773
        %v829 = vmul.f32 %v313, %v773
        %v830 = vmul.f32 %v314, %v773
        %v831 = vmul.f32 %v315, %v773
        %v832 = vmul.f32 %v316, %v773
        %v833 = vmul.f32 %v317, %v773
        %v834 = vmul.f32 %v318, %v773
        %v835 = vmul.f32 %v319, %v773
        %v836 = vmul.f32 %v320, %v773
        %v837 = vmul.f32 %v321, %v773
        %v838 = vmul.f32 %v322, %v773
        %v839 = vld [vmem:[%s246] sm:$0xff]
        %v840 = vld [vmem:[%s246 + $0x8] sm:$0xff]
        %842 = vset.pattern.permute.xlu0 0
        %843 = vperm.xlu0 %842, %v839
        %v844 = vpop.permute.xlu0 %843
        %847 = vset.pattern.permute.xlu0 0
        %848 = vperm.xlu0 %847, %v840
        %v849 = vpop.permute.xlu0 %848
        %v851 = vadd.f32 %v775, %v844
        %v852 = vadd.f32 %v776, %v844
        %v853 = vadd.f32 %v777, %v844
        %v854 = vadd.f32 %v778, %v844
        %v855 = vadd.f32 %v779, %v844
        %v856 = vadd.f32 %v780, %v844
        %v857 = vadd.f32 %v781, %v844
        %v858 = vadd.f32 %v782, %v844
        %v859 = vadd.f32 %v783, %v844
        %v860 = vadd.f32 %v784, %v844
        %v861 = vadd.f32 %v785, %v844
        %v862 = vadd.f32 %v786, %v844
        %v863 = vadd.f32 %v787, %v844
        %v864 = vadd.f32 %v788, %v844
        %v865 = vadd.f32 %v789, %v844
        %v866 = vadd.f32 %v790, %v844
        %v867 = vadd.f32 %v791, %v844
        %v868 = vadd.f32 %v792, %v844
        %v869 = vadd.f32 %v793, %v844
        %v870 = vadd.f32 %v794, %v844
        %v871 = vadd.f32 %v795, %v844
        %v872 = vadd.f32 %v796, %v844
        %v873 = vadd.f32 %v797, %v844
        %v874 = vadd.f32 %v798, %v844
        %v875 = vadd.f32 %v799, %v844
        %v876 = vadd.f32 %v800, %v844
        %v877 = vadd.f32 %v801, %v844
        %v878 = vadd.f32 %v802, %v844
        %v879 = vadd.f32 %v803, %v844
        %v880 = vadd.f32 %v804, %v844
        %v881 = vadd.f32 %v805, %v844
        %v882 = vadd.f32 %v806, %v844
        %v883 = vadd.f32 %v807, %v849
        %v884 = vadd.f32 %v808, %v849
        %v885 = vadd.f32 %v809, %v849
        %v886 = vadd.f32 %v810, %v849
        %v887 = vadd.f32 %v811, %v849
        %v888 = vadd.f32 %v812, %v849
        %v889 = vadd.f32 %v813, %v849
        %v890 = vadd.f32 %v814, %v849
        %v891 = vadd.f32 %v815, %v849
        %v892 = vadd.f32 %v816, %v849
        %v893 = vadd.f32 %v817, %v849
        %v894 = vadd.f32 %v818, %v849
        %v895 = vadd.f32 %v819, %v849
        %v896 = vadd.f32 %v820, %v849
        %v897 = vadd.f32 %v821, %v849
        %v898 = vadd.f32 %v822, %v849
        %v899 = vadd.f32 %v823, %v849
        %v900 = vadd.f32 %v824, %v849
        %v901 = vadd.f32 %v825, %v849
        %v902 = vadd.f32 %v826, %v849
        %v903 = vadd.f32 %v827, %v849
        %v904 = vadd.f32 %v828, %v849
        %v905 = vadd.f32 %v829, %v849
        %v906 = vadd.f32 %v830, %v849
        %v907 = vadd.f32 %v831, %v849
        %v908 = vadd.f32 %v832, %v849
        %v909 = vadd.f32 %v833, %v849
        %v910 = vadd.f32 %v834, %v849
        %v911 = vadd.f32 %v835, %v849
        %v912 = vadd.f32 %v836, %v849
        %v913 = vadd.f32 %v837, %v849
        %v914 = vadd.f32 %v838, %v849
        %915 = vst [vmem:[%s257] sm:$0xff] %v851
        %916 = vst [vmem:[%s257 + $0x8] sm:$0xff] %v852
        %917 = vst [vmem:[%s257 + $0x10] sm:$0xff] %v853
        %918 = vst [vmem:[%s257 + $0x18] sm:$0xff] %v854
        %919 = vst [vmem:[%s257 + $0x20] sm:$0xff] %v855
        %920 = vst [vmem:[%s257 + $0x28] sm:$0xff] %v856
        %921 = vst [vmem:[%s257 + $0x30] sm:$0xff] %v857
        %922 = vst [vmem:[%s257 + $0x38] sm:$0xff] %v858
        %923 = vst [vmem:[%s257 + $0x40] sm:$0xff] %v859
        %924 = vst [vmem:[%s257 + $0x48] sm:$0xff] %v860
        %925 = vst [vmem:[%s257 + $0x50] sm:$0xff] %v861
        %926 = vst [vmem:[%s257 + $0x58] sm:$0xff] %v862
        %927 = vst [vmem:[%s257 + $0x60] sm:$0xff] %v863
        %928 = vst [vmem:[%s257 + $0x68] sm:$0xff] %v864
        %929 = vst [vmem:[%s257 + $0x70] sm:$0xff] %v865
        %930 = vst [vmem:[%s257 + $0x78] sm:$0xff] %v866
        %931 = vst [vmem:[%s257 + $0x80] sm:$0xff] %v867
        %932 = vst [vmem:[%s257 + $0x88] sm:$0xff] %v868
        %933 = vst [vmem:[%s257 + $0x90] sm:$0xff] %v869
        %934 = vst [vmem:[%s257 + $0x98] sm:$0xff] %v870
        %935 = vst [vmem:[%s257 + $0xa0] sm:$0xff] %v871
        %936 = vst [vmem:[%s257 + $0xa8] sm:$0xff] %v872
        %937 = vst [vmem:[%s257 + $0xb0] sm:$0xff] %v873
        %938 = vst [vmem:[%s257 + $0xb8] sm:$0xff] %v874
        %939 = vst [vmem:[%s257 + $0xc0] sm:$0xff] %v875
        %940 = vst [vmem:[%s257 + $0xc8] sm:$0xff] %v876
        %941 = vst [vmem:[%s257 + $0xd0] sm:$0xff] %v877
        %942 = vst [vmem:[%s257 + $0xd8] sm:$0xff] %v878
        %943 = vst [vmem:[%s257 + $0xe0] sm:$0xff] %v879
        %944 = vst [vmem:[%s257 + $0xe8] sm:$0xff] %v880
        %945 = vst [vmem:[%s257 + $0xf0] sm:$0xff] %v881
        %946 = vst [vmem:[%s257 + $0xf8] sm:$0xff] %v882
        %947 = vst [vmem:[%s257 + $0x100] sm:$0xff] %v883
        %948 = vst [vmem:[%s257 + $0x108] sm:$0xff] %v884
        %949 = vst [vmem:[%s257 + $0x110] sm:$0xff] %v885
        %950 = vst [vmem:[%s257 + $0x118] sm:$0xff] %v886
        %951 = vst [vmem:[%s257 + $0x120] sm:$0xff] %v887
        %952 = vst [vmem:[%s257 + $0x128] sm:$0xff] %v888
        %953 = vst [vmem:[%s257 + $0x130] sm:$0xff] %v889
        %954 = vst [vmem:[%s257 + $0x138] sm:$0xff] %v890
        %955 = vst [vmem:[%s257 + $0x140] sm:$0xff] %v891
        %956 = vst [vmem:[%s257 + $0x148] sm:$0xff] %v892
        %957 = vst [vmem:[%s257 + $0x150] sm:$0xff] %v893
        %958 = vst [vmem:[%s257 + $0x158] sm:$0xff] %v894
        %959 = vst [vmem:[%s257 + $0x160] sm:$0xff] %v895
        %960 = vst [vmem:[%s257 + $0x168] sm:$0xff] %v896
        %961 = vst [vmem:[%s257 + $0x170] sm:$0xff] %v897
        %962 = vst [vmem:[%s257 + $0x178] sm:$0xff] %v898
        %963 = vst [vmem:[%s257 + $0x180] sm:$0xff] %v899
        %964 = vst [vmem:[%s257 + $0x188] sm:$0xff] %v900
        %965 = vst [vmem:[%s257 + $0x190] sm:$0xff] %v901
        %966 = vst [vmem:[%s257 + $0x198] sm:$0xff] %v902
        %967 = vst [vmem:[%s257 + $0x1a0] sm:$0xff] %v903
        %968 = vst [vmem:[%s257 + $0x1a8] sm:$0xff] %v904
        %969 = vst [vmem:[%s257 + $0x1b0] sm:$0xff] %v905
        %970 = vst [vmem:[%s257 + $0x1b8] sm:$0xff] %v906
        %971 = vst [vmem:[%s257 + $0x1c0] sm:$0xff] %v907
        %972 = vst [vmem:[%s257 + $0x1c8] sm:$0xff] %v908
        %973 = vst [vmem:[%s257 + $0x1d0] sm:$0xff] %v909
        %974 = vst [vmem:[%s257 + $0x1d8] sm:$0xff] %v910
        %975 = vst [vmem:[%s257 + $0x1e0] sm:$0xff] %v911
        %976 = vst [vmem:[%s257 + $0x1e8] sm:$0xff] %v912
        %977 = vst [vmem:[%s257 + $0x1f0] sm:$0xff] %v913
        %978 = vst [vmem:[%s257 + $0x1f8] sm:$0xff] %v914
      $region40: #{ibn_forward.3} parent=31 // pred_fallthru
        _
      %s979 = smul.u32 2, %s19
      %p980 = scmp.lt.s32.totalorder %s18, 1
      %s981 = scalar_select %p980, %s18, 1
      %p982 = scmp.lt.s32.totalorder %s979, 3
      %s983 = scalar_select %p982, %s979, 3
      %s984 = smul.addr %s983, 32
      %s985 = smul.addr %s981, 128
      %s986 = sadd.s32 %s984, %s985
      %s987 = smul.addr %s986, 8
      %s988 = scalar_lea.vmem %s3, %s987
      // Predicated region
      $region41: #{ibn_forward.3} parent=31 // pred_check
        %p989 = pneg %p126
      $region42: #{ibn_forward.3} parent=31 // pred_check_branch
        %991 = sbr.rel (%p989) target = $region44
      $region43: #{ibn_forward.3} parent=31 // pred_region
        %s992 = smul.u32 2, %s19
      $region44: #{ibn_forward.3} parent=31 // pred_fallthru
        _
    $region32: #{ibn_forward.3} parent=5 // pred_fallthru
      _
    %p993 = scmp.le.s32.totalorder 2, %s9
    // Predicated region
    $region45: #{ibn_forward.3} parent=5 // pred_check
      %p994 = pneg %p993
    $region46: #{ibn_forward.3} parent=5 // pred_check_branch
      %996 = sbr.rel (%p994) target = $region48
    $region47: #{ibn_forward.3} parent=5 // pred_region
      %s997 = ssub.s32 %s9, 2
      // Predicated region
      $region49: #{ibn_forward.3} parent=47 // pred_check
        %p998 = pneg %p132
      $region50: #{ibn_forward.3} parent=47 // pred_check_branch
        %1000 = sbr.rel (%p998) target = $region52
      $region51: #{ibn_forward.3} parent=47 // pred_region
        %s1001 = smul.u32 2, %s21
        %p1002 = scmp.lt.s32.totalorder %s20, 1
        %s1003 = scalar_select %p1002, %s20, 1
        %p1004 = scmp.lt.s32.totalorder %s1001, 3
        %s1005 = scalar_select %p1004, %s1001, 3
        %s1006 = smul.addr %s1005, 32
        %s1007 = smul.addr %s1003, 128
        %s1008 = sadd.s32 %s1006, %s1007
        %s1009 = smul.addr %s1008, 8
        %s1010 = scalar_lea.vmem %s3, %s1009
      $region52: #{ibn_forward.3} parent=47 // pred_fallthru
        _
    $region48: #{ibn_forward.3} parent=5 // pred_fallthru
      _
  $region6: #{ibn_forward.3} parent=0 // loop_footer
    %s13 = sadd.s32 1, %s9
  $region7: #{ibn_forward.3} parent=0 // loop_footer_branch
    %8 = sbr.rel target = $region3
  $region8: #{ibn_forward.3} parent=0 // loop_exit
    _

</llo_original>
